<compile_context>
chip_gen: v7x
topology: tpu7x:2x2x1
jax: 0.10.0
libtpu: 0.0.40
codegen_flags: <defaults>
</compile_context>

<pallas_src>
import jax
import jax.numpy as jnp
from jax.experimental import pallas as pl
from jax.experimental.pallas import tpu as pltpu

LANE = 128
_EPS = 1e-5


def _vmem_limit_bytes():
    # Generation-aware VMEM budget with ~25% headroom for double buffers and
    # compiler-internal scratch (v7x has only 64 MiB per TensorCore).
    try:
        cap = pltpu.get_tpu_info().vmem_capacity_bytes
        return int(cap * 3 // 4)
    except Exception:  # fall back to a safe default
        return 64 * 1024 * 1024


def _conv3x3_chunked(src_bf16, w_ref, H, W):
    """3x3 conv as 3 accumulating MXU matmuls (K = 3*C each), f32 accumulate.

    src_bf16: (H+2, W+2, C) bf16 value, zero-padded by 1 in H and W.
    w_ref   : (3, 3*C, C) bf16 ref; row index inside a ky chunk = kx*C + cin.
    returns : (H*W, C) f32
    """
    C = src_bf16.shape[-1]
    M = H * W
    acc = None
    for ky in range(3):
        # TODO(synk): tap slices start at sublane offsets 0/1/2 inside the
        # (W+2)-wide buffer -> XLU relayouts; pad W to an 8-sublane boundary
        # (or use pltpu.roll) to remove them.
        taps = [src_bf16[ky:ky + H, kx:kx + W, :] for kx in range(3)]
        patch = jnp.concatenate(taps, axis=-1).reshape(M, 3 * C)
        part = jnp.dot(patch, w_ref[ky], preferred_element_type=jnp.float32)
        acc = part if acc is None else acc + part
    return acc


def _conv1_kernel(xp_ref, w1_ref, y1_ref, stat1_ref):
    # xp_ref   : (1, H+2, W+2, C) f32   one image, zero-padded in H/W/C
    # w1_ref   : (3, 3*C, C)      bf16
    # y1_ref   : (1, H, W, C)     bf16  raw conv1 output (pre-BN)
    # stat1_ref: (1, 2, C)        f32   per-image [sum, sum-of-squares]
    _, Hp, Wp, C = xp_ref.shape
    H, W = Hp - 2, Wp - 2
    xpb = xp_ref[0].astype(jnp.bfloat16)
    acc = _conv3x3_chunked(xpb, w1_ref, H, W)                     # (M, C) f32
    y1_ref[0] = acc.reshape(H, W, C).astype(y1_ref.dtype)
    s1 = jnp.sum(acc, axis=0, keepdims=True)
    s2 = jnp.sum(acc * acc, axis=0, keepdims=True)
    stat1_ref[0] = jnp.concatenate([s1, s2], axis=0)


def _conv2_kernel(y1_ref, sc1_ref, sh1_ref, w2_ref, y2_ref, stat2_ref, ap_ref):
    # y1_ref   : (1, H, W, C) bf16   raw conv1 output
    # sc1/sh1  : (1, C) f32          folded BN1 scale / shift
    # w2_ref   : (3, 3*C, C) bf16
    # y2_ref   : (1, H, W, C) f32    raw conv2 output (pre-BN)
    # stat2_ref: (1, 2, C) f32       per-image [sum, sum-of-squares]
    # ap_ref   : (H+2, W+2, C) bf16  VMEM scratch: padded bn1+relu activation
    _, H, W, C = y1_ref.shape
    M = H * W

    # BN1 as a single FMA (scale/shift folded in the wrapper) + ReLU, in f32.
    a = jnp.maximum(
        y1_ref[0].astype(jnp.float32).reshape(M, C) * sc1_ref[...] + sh1_ref[...],
        0.0)

    # Zero only the halo ring (every step: megacore-safe), then the interior.
    zrow = jnp.zeros((1, W + 2, C), ap_ref.dtype)
    zcol = jnp.zeros((H, 1, C), ap_ref.dtype)
    ap_ref[0:1, :, :] = zrow
    ap_ref[H + 1:H + 2, :, :] = zrow
    ap_ref[1:1 + H, 0:1, :] = zcol
    ap_ref[1:1 + H, W + 1:W + 2, :] = zcol
    ap_ref[1:1 + H, 1:1 + W, :] = a.reshape(H, W, C).astype(ap_ref.dtype)

    acc = _conv3x3_chunked(ap_ref[...], w2_ref, H, W)             # (M, C) f32
    y2_ref[0] = acc.reshape(H, W, C).astype(y2_ref.dtype)
    s1 = jnp.sum(acc, axis=0, keepdims=True)
    s2 = jnp.sum(acc * acc, axis=0, keepdims=True)
    stat2_ref[0] = jnp.concatenate([s1, s2], axis=0)


def _bn2_residual_kernel(xp_ref, y2_ref, sc2_ref, sh2_ref, out_ref):
    # out = relu(y2 * scale2 + shift2 + x)   (identity residual = input interior)
    _, Hp, Wp, C = xp_ref.shape
    H, W = Hp - 2, Wp - 2
    res = xp_ref[0][1:1 + H, 1:1 + W, :]
    out = jnp.maximum(y2_ref[0] * sc2_ref[0] + sh2_ref[0] + res, 0.0)
    out_ref[0] = out.astype(out_ref.dtype)


def residual_block(x_nchw, w1_oihw, w2_oihw, g1, b1, g2, b2):
    N, Cin, H, W = x_nchw.shape
    Cout = w1_oihw.shape[0]
    assert Cin == Cout, "identity residual path requires in_channel == out_channel"

    Cp = ((Cout + LANE - 1) // LANE) * LANE     # lane-dense channels
    Hp, Wp = H + 2, W + 2
    M_total = N * H * W

    # ---- plain-JAX glue: layout, channel padding, H/W zero pad ----
    x = jnp.transpose(x_nchw, (0, 2, 3, 1)).astype(jnp.float32)          # NHWC
    xp = jnp.pad(x, ((0, 0), (1, 1), (1, 1), (0, Cp - Cin)))

    def prep_w(w_oihw):
        # OIHW -> (3, 3*Cp, Cp) bf16 ky-chunked im2col weights; row = kx*Cp+cin.
        wt = jnp.transpose(w_oihw, (2, 3, 1, 0))                          # (3,3,Cin,Cout)
        wt = jnp.pad(wt, ((0, 0), (0, 0), (0, Cp - Cin), (0, Cp - Cout)))
        return wt.reshape(3, 3 * Cp, Cp).astype(jnp.bfloat16)

    w1 = prep_w(w1_oihw)
    w2 = prep_w(w2_oihw)

    cparams = pltpu.CompilerParams(
        dimension_semantics=("parallel",),
        vmem_limit_bytes=_vmem_limit_bytes())

    img_spec_p = pl.BlockSpec((1, Hp, Wp, Cp), lambda n: (n, 0, 0, 0))
    img_spec = pl.BlockSpec((1, H, W, Cp), lambda n: (n, 0, 0, 0))
    w_spec = pl.BlockSpec((3, 3 * Cp, Cp), lambda n: (0, 0, 0))
    vec_spec = pl.BlockSpec((1, Cp), lambda n: (0, 0))
    stat_spec = pl.BlockSpec((1, 2, Cp), lambda n: (n, 0, 0))

    # ---- pass 1: conv1 + per-image BN1 partial statistics ----
    y1, stat1 = pl.pallas_call(
        _conv1_kernel,
        grid=(N,),
        in_specs=[img_spec_p, w_spec],
        out_specs=(img_spec, stat_spec),
        out_shape=(jax.ShapeDtypeStruct((N, H, W, Cp), jnp.bfloat16),
                   jax.ShapeDtypeStruct((N, 2, Cp), jnp.float32)),
        compiler_params=cparams,
    )(xp, w1)

    def fold_bn(stats, gamma, beta):
        # Fold training-mode BN into one FMA: scale = g*rsqrt(var+eps),
        # shift = b - mean*scale.  Tiny (Cp-sized) cross-image reduction.
        s1 = jnp.sum(stats[:, 0, :], axis=0)
        s2 = jnp.sum(stats[:, 1, :], axis=0)
        mean = s1 / M_total
        var = jnp.maximum(s2 / M_total - mean * mean, 0.0)
        gp = jnp.pad(gamma.astype(jnp.float32), (0, Cp - Cout))
        bp = jnp.pad(beta.astype(jnp.float32), (0, Cp - Cout))
        scale = gp * jax.lax.rsqrt(var + _EPS)
        shift = bp - mean * scale
        return scale.reshape(1, Cp), shift.reshape(1, Cp)

    sc1, sh1 = fold_bn(stat1, g1, b1)

    # ---- pass 2: bn1 + relu + conv2 + per-image BN2 partial statistics ----
    y2, stat2 = pl.pallas_call(
        _conv2_kernel,
        grid=(N,),
        in_specs=[img_spec, vec_spec, vec_spec, w_spec],
        out_specs=(img_spec, stat_spec),
        out_shape=(jax.ShapeDtypeStruct((N, H, W, Cp), jnp.float32),
                   jax.ShapeDtypeStruct((N, 2, Cp), jnp.float32)),
        scratch_shapes=[pltpu.VMEM((Hp, Wp, Cp), jnp.bfloat16)],
        compiler_params=cparams,
    )(y1, sc1, sh1, w2)

    sc2, sh2 = fold_bn(stat2, g2, b2)

    # ---- pass 3: bn2 + identity residual + relu ----
    out_nhwc = pl.pallas_call(
        _bn2_residual_kernel,
        grid=(N,),
        in_specs=[img_spec_p, img_spec, vec_spec, vec_spec],
        out_specs=img_spec,
        out_shape=jax.ShapeDtypeStruct((N, H, W, Cp), jnp.float32),
        compiler_params=cparams,
    )(xp, y2, sc2, sh2)

    out = out_nhwc[..., :Cout]                                  # drop channel pad
    return jnp.transpose(out, (0, 3, 1, 2)).astype(x_nchw.dtype)  # back to NCHW


def reference(x, w1, w2, g1, b1, g2, b2):
    """Pure-JAX reference matching the PyTorch forward (training-mode BN)."""
    def conv(z, w):
        return jax.lax.conv_general_dilated(
            z, w, window_strides=(1, 1), padding=((1, 1), (1, 1)),
            dimension_numbers=('NCHW', 'OIHW', 'NCHW'))

    def bn(z, g, b):
        mean = jnp.mean(z, axis=(0, 2, 3), keepdims=True)
        var = jnp.mean((z - mean) ** 2, axis=(0, 2, 3), keepdims=True)
        return ((z - mean) * jax.lax.rsqrt(var + _EPS)
                * g.reshape(1, -1, 1, 1) + b.reshape(1, -1, 1, 1))

    out = jax.nn.relu(bn(conv(x, w1), g1, b1))
    out = bn(conv(out, w2), g2, b2)
    return jax.nn.relu(out + x)


if __name__ == "__main__":
    key = jax.random.PRNGKey(0)
    kx, k1, k2, k3, k4, k5, k6 = jax.random.split(key, 7)

    N, C, H, W = 2, 4, 16, 16
    x = jax.random.normal(kx, (N, C, H, W), jnp.float32)
    # conv weights in PyTorch OIHW convention, deterministic init
    w1 = 0.2 * jax.random.normal(k1, (C, C, 3, 3), jnp.float32)
    w2 = 0.2 * jax.random.normal(k2, (C, C, 3, 3), jnp.float32)
    # BN affine params (deterministic, non-trivial)
    g1 = 1.0 + 0.1 * jax.random.normal(k3, (C,), jnp.float32)
    b1 = 0.1 * jax.random.normal(k4, (C,), jnp.float32)
    g2 = 1.0 + 0.1 * jax.random.normal(k5, (C,), jnp.float32)
    b2 = 0.1 * jax.random.normal(k6, (C,), jnp.float32)

    out = jax.block_until_ready(residual_block(x, w1, w2, g1, b1, g2, b2))
    ref = reference(x, w1, w2, g1, b1, g2, b2)

    assert out.shape == (N, C, H, W)
    # bf16 MXU operands / bf16 intermediate -> ~1e-2 drift vs the f32 reference.
    max_err = float(jnp.max(jnp.abs(out - ref)))
    assert max_err < 5e-2, f"max_err={max_err}"
    print("KERNEL_OK")
</pallas_src>

<mosaic_0001>
module attributes {stable_mosaic.version = 11 : i64} {
  func.func @_conv1_kernel(%arg0: i32, %arg1: memref<1x18x18x128xf32, #tpu.memory_space<vmem>>, %arg2: memref<3x384x128xbf16, #tpu.memory_space<vmem>>, %arg3: memref<1x16x16x128xbf16, #tpu.memory_space<vmem>>, %arg4: memref<1x2x128xf32, #tpu.memory_space<vmem>>) attributes {dimension_semantics = [#tpu.dimension_semantics<parallel>], iteration_bounds = array<i64: 2>, scalar_prefetch = 0 : i64, scratch_operands = 0 : i64, tpu.core_type = #tpu.core_type<tc>, window_params = [{transform_indices = @transform_0, window_bounds = array<i64: 1, 18, 18, 128>}, {pipeline_mode = #tpu.pipeline_mode<synchronous>, transform_indices = @transform_1, window_bounds = array<i64: 3, 384, 128>}, {transform_indices = @transform_2, window_bounds = array<i64: 1, 16, 16, 128>}, {transform_indices = @transform_3, window_bounds = array<i64: 1, 2, 128>}]} {
    %c0 = arith.constant 0 : index
    %c0_0 = arith.constant 0 : index
    %c0_1 = arith.constant 0 : index
    %c0_2 = arith.constant 0 : index
    %0 = vector.load %arg1[%c0, %c0_0, %c0_1, %c0_2] : memref<1x18x18x128xf32, #tpu.memory_space<vmem>>, vector<1x18x18x128xf32>
    %1 = vector.shape_cast %0 : vector<1x18x18x128xf32> to vector<18x18x128xf32>
    %2 = arith.truncf %1 : vector<18x18x128xf32> to vector<18x18x128xbf16>
    %3 = vector.extract_strided_slice %2 {offsets = [0, 0, 0], sizes = [16, 16, 128], strides = [1, 1, 1]} : vector<18x18x128xbf16> to vector<16x16x128xbf16>
    %4 = vector.extract_strided_slice %2 {offsets = [0, 1, 0], sizes = [16, 16, 128], strides = [1, 1, 1]} : vector<18x18x128xbf16> to vector<16x16x128xbf16>
    %5 = vector.extract_strided_slice %2 {offsets = [0, 2, 0], sizes = [16, 16, 128], strides = [1, 1, 1]} : vector<18x18x128xbf16> to vector<16x16x128xbf16>
    %6 = tpu.concatenate %3, %4, %5 in 2 : vector<16x16x128xbf16>, vector<16x16x128xbf16>, vector<16x16x128xbf16> -> vector<16x16x384xbf16>
    %7 = vector.shape_cast %6 : vector<16x16x384xbf16> to vector<256x384xbf16>
    %c0_3 = arith.constant 0 : index
    %c0_4 = arith.constant 0 : index
    %c0_5 = arith.constant 0 : index
    %8 = vector.load %arg2[%c0_3, %c0_4, %c0_5] : memref<3x384x128xbf16, #tpu.memory_space<vmem>>, vector<1x384x128xbf16>
    %9 = vector.shape_cast %8 : vector<1x384x128xbf16> to vector<384x128xbf16>
    %cst = arith.constant dense<0.000000e+00> : vector<256x128xf32>
    %10 = tpu.matmul %7, %9, %cst {dimension_numbers = #tpu.dot_dimension_numbers<[1], [0], [0], [1], [0, 0, 1, 1], [], []>} : vector<256x384xbf16>, vector<384x128xbf16>, vector<256x128xf32> -> vector<256x128xf32>
    %11 = vector.extract_strided_slice %2 {offsets = [1, 0, 0], sizes = [16, 16, 128], strides = [1, 1, 1]} : vector<18x18x128xbf16> to vector<16x16x128xbf16>
    %12 = vector.extract_strided_slice %2 {offsets = [1, 1, 0], sizes = [16, 16, 128], strides = [1, 1, 1]} : vector<18x18x128xbf16> to vector<16x16x128xbf16>
    %13 = vector.extract_strided_slice %2 {offsets = [1, 2, 0], sizes = [16, 16, 128], strides = [1, 1, 1]} : vector<18x18x128xbf16> to vector<16x16x128xbf16>
    %14 = tpu.concatenate %11, %12, %13 in 2 : vector<16x16x128xbf16>, vector<16x16x128xbf16>, vector<16x16x128xbf16> -> vector<16x16x384xbf16>
    %15 = vector.shape_cast %14 : vector<16x16x384xbf16> to vector<256x384xbf16>
    %c1 = arith.constant 1 : index
    %c0_6 = arith.constant 0 : index
    %c0_7 = arith.constant 0 : index
    %16 = vector.load %arg2[%c1, %c0_6, %c0_7] : memref<3x384x128xbf16, #tpu.memory_space<vmem>>, vector<1x384x128xbf16>
    %17 = vector.shape_cast %16 : vector<1x384x128xbf16> to vector<384x128xbf16>
    %cst_8 = arith.constant dense<0.000000e+00> : vector<256x128xf32>
    %18 = tpu.matmul %15, %17, %cst_8 {dimension_numbers = #tpu.dot_dimension_numbers<[1], [0], [0], [1], [0, 0, 1, 1], [], []>} : vector<256x384xbf16>, vector<384x128xbf16>, vector<256x128xf32> -> vector<256x128xf32>
    %19 = arith.addf %10, %18 : vector<256x128xf32>
    %20 = vector.extract_strided_slice %2 {offsets = [2, 0, 0], sizes = [16, 16, 128], strides = [1, 1, 1]} : vector<18x18x128xbf16> to vector<16x16x128xbf16>
    %21 = vector.extract_strided_slice %2 {offsets = [2, 1, 0], sizes = [16, 16, 128], strides = [1, 1, 1]} : vector<18x18x128xbf16> to vector<16x16x128xbf16>
    %22 = vector.extract_strided_slice %2 {offsets = [2, 2, 0], sizes = [16, 16, 128], strides = [1, 1, 1]} : vector<18x18x128xbf16> to vector<16x16x128xbf16>
    %23 = tpu.concatenate %20, %21, %22 in 2 : vector<16x16x128xbf16>, vector<16x16x128xbf16>, vector<16x16x128xbf16> -> vector<16x16x384xbf16>
    %24 = vector.shape_cast %23 : vector<16x16x384xbf16> to vector<256x384xbf16>
    %c2 = arith.constant 2 : index
    %c0_9 = arith.constant 0 : index
    %c0_10 = arith.constant 0 : index
    %25 = vector.load %arg2[%c2, %c0_9, %c0_10] : memref<3x384x128xbf16, #tpu.memory_space<vmem>>, vector<1x384x128xbf16>
    %26 = vector.shape_cast %25 : vector<1x384x128xbf16> to vector<384x128xbf16>
    %cst_11 = arith.constant dense<0.000000e+00> : vector<256x128xf32>
    %27 = tpu.matmul %24, %26, %cst_11 {dimension_numbers = #tpu.dot_dimension_numbers<[1], [0], [0], [1], [0, 0, 1, 1], [], []>} : vector<256x384xbf16>, vector<384x128xbf16>, vector<256x128xf32> -> vector<256x128xf32>
    %28 = arith.addf %19, %27 : vector<256x128xf32>
    %29 = vector.shape_cast %28 : vector<256x128xf32> to vector<16x16x128xf32>
    %30 = arith.truncf %29 : vector<16x16x128xf32> to vector<16x16x128xbf16>
    %c0_12 = arith.constant 0 : index
    %c0_13 = arith.constant 0 : index
    %c0_14 = arith.constant 0 : index
    %c0_15 = arith.constant 0 : index
    %31 = vector.load %arg3[%c0_12, %c0_13, %c0_14, %c0_15] : memref<1x16x16x128xbf16, #tpu.memory_space<vmem>>, vector<1x16x16x128xbf16>
    %32 = vector.shape_cast %31 : vector<1x16x16x128xbf16> to vector<16x16x128xbf16>
    %33 = vector.shape_cast %30 : vector<16x16x128xbf16> to vector<1x16x16x128xbf16>
    tpu.vector_store %arg3[%c0_12, %c0_13, %c0_14, %c0_15], %33 {strides = array<i32>} : memref<1x16x16x128xbf16, #tpu.memory_space<vmem>>, vector<1x16x16x128xbf16>,
    %cst_16 = arith.constant dense<0.000000e+00> : vector<128xf32>
    %34 = vector.multi_reduction <add>, %28, %cst_16 [0] : vector<256x128xf32> to vector<128xf32>
    %35 = vector.shape_cast %34 : vector<128xf32> to vector<1x128xf32>
    %36 = arith.mulf %28, %28 : vector<256x128xf32>
    %cst_17 = arith.constant dense<0.000000e+00> : vector<128xf32>
    %37 = vector.multi_reduction <add>, %36, %cst_17 [0] : vector<256x128xf32> to vector<128xf32>
    %38 = vector.shape_cast %37 : vector<128xf32> to vector<1x128xf32>
    %39 = tpu.concatenate %35, %38 in 0 : vector<1x128xf32>, vector<1x128xf32> -> vector<2x128xf32>
    %c0_18 = arith.constant 0 : index
    %c0_19 = arith.constant 0 : index
    %c0_20 = arith.constant 0 : index
    %40 = vector.load %arg4[%c0_18, %c0_19, %c0_20] : memref<1x2x128xf32, #tpu.memory_space<vmem>>, vector<1x2x128xf32>
    %41 = vector.shape_cast %40 : vector<1x2x128xf32> to vector<2x128xf32>
    %42 = vector.shape_cast %39 : vector<2x128xf32> to vector<1x2x128xf32>
    tpu.vector_store %arg4[%c0_18, %c0_19, %c0_20], %42 {strides = array<i32>} : memref<1x2x128xf32, #tpu.memory_space<vmem>>, vector<1x2x128xf32>,
    return
  }
  func.func @transform_0(%arg0: i32) -> (i32, i32, i32, i32) {
    %c0_i32 = arith.constant 0 : i32
    %c0_i32_0 = arith.constant 0 : i32
    %c0_i32_1 = arith.constant 0 : i32
    %c0_i32_2 = arith.constant 0 : i32
    return %arg0, %c0_i32, %c0_i32_0, %c0_i32_1 : i32, i32, i32, i32
  }
  func.func @transform_1(%arg0: i32) -> (i32, i32, i32) {
    %c0_i32 = arith.constant 0 : i32
    %c0_i32_0 = arith.constant 0 : i32
    %c0_i32_1 = arith.constant 0 : i32
    %c0_i32_2 = arith.constant 0 : i32
    return %c0_i32, %c0_i32_0, %c0_i32_1 : i32, i32, i32
  }
  func.func @transform_2(%arg0: i32) -> (i32, i32, i32, i32) {
    %c0_i32 = arith.constant 0 : i32
    %c0_i32_0 = arith.constant 0 : i32
    %c0_i32_1 = arith.constant 0 : i32
    %c0_i32_2 = arith.constant 0 : i32
    return %arg0, %c0_i32, %c0_i32_0, %c0_i32_1 : i32, i32, i32, i32
  }
  func.func @transform_3(%arg0: i32) -> (i32, i32, i32) {
    %c0_i32 = arith.constant 0 : i32
    %c0_i32_0 = arith.constant 0 : i32
    %c0_i32_1 = arith.constant 0 : i32
    return %arg0, %c0_i32, %c0_i32_0 : i32, i32, i32
  }
}

</mosaic_0001>

<llo_original>
// kernel: tpu_custom_call.1
$region0: #{tpu_custom_call.1}
  #allocation0 [shape = 'u32[]', space=smem, size = 0x4, offset = 0x4, fixed_abs, tag = 'smem constant byte address 0x4 - core index']
  #allocation1 [shape = 'u32[144,128]{1,0:T(1,128)}', space=vmem, size = 0x12000, scoped, tag = 'internal scratch']
  %s0 = inlined_call_operand.hbm [shape: f32[2,18,18,128], index: 0, kind: input, shape index: {}]
  %s1 = inlined_call_operand.hbm [shape: bf16[3,384,128], index: 1, kind: input, shape index: {}]
  %s2 = inlined_call_operand.hbm [shape: bf16[2,16,16,128], index: 2, kind: output, shape index: {0}]
  %s3 = inlined_call_operand.hbm [shape: f32[2,2,128], index: 3, kind: output, shape index: {1}]
  %4 = xla_tuple %s2, %s3
  %s5 = sld [smem:[#allocation0]]
  $region57: #{tpu_custom_call.1} parent=0
    _
  %s7 = ssub.s32 1, %s5
  %s8 = scalar_select 0, %s7, %s5
  $region1: #{tpu_custom_call.1} parent=0
    #allocation2 [shape = 'u8[442368]{0}', space=vmem, size = 0x6c000, scoped, tag = 'input window, operand 0']
    #allocation3 [shape = 's32[2]{0}', space=sflag, size = 0x8, scoped, tag = 'scoped memory for tpu_custom_call.1']
    #allocation4 [shape = 's32[2]{0}', space=sflag, size = 0x8, scoped, tag = 'scoped memory for tpu_custom_call.1']
    #allocation5 [shape = 'u8[294912]{0}', space=vmem, size = 0x48000, scoped, tag = 'input window, operand 1, single buffered']
    #allocation6 [shape = 's32[1]{0}', space=sflag, size = 0x4, scoped, tag = 'scoped memory for tpu_custom_call.1']
    #allocation7 [shape = 'u8[131072]{0}', space=vmem, size = 0x20000, scoped, tag = 'output window, operand 0']
    #allocation8 [shape = 'u8[2048]{0}', space=vmem, size = 0x800, scoped, tag = 'output window, operand 1']
    #allocation9 [shape = 's32[2]{0}', space=sflag, size = 0x8, scoped, tag = 'scoped memory for tpu_custom_call.1']
    %9 = vsyncpa [#allocation3], 0
    %s10 = scalar_lea.sflag [#allocation3], 1
    %11 = vsyncpa %s10, 0
    %12 = vsyncpa [#allocation6], 0
    %13 = vsyncpa [#allocation4], 0
    %s14 = scalar_lea.sflag [#allocation4], 1
    %15 = vsyncpa %s14, 0
    %16 = vsyncpa [#allocation9], 0
    %s17 = scalar_lea.sflag [#allocation9], 1
    %18 = vsyncpa %s17, 0
    loop: start=0, step=1, limit=4
    $region2: #{tpu_custom_call.1} parent=1 // loop_pre_header
      _
    $region3: #{tpu_custom_call.1} parent=1 // loop_header
      %s20 = sphi 0, %s24
      %p21 = scmp.ge.s32.totalorder %s20, 4
      %s30 = sphi 0, %s32
      %s33 = sphi 0, %s30
      %s34 = sphi 0, %s33
      %s50 = sphi 0, %s34
      %s54 = sphi 0, %s54
      %s56 = sphi 0, %s54
      %s57 = sphi 0, %s56
      %s71 = sphi 0, %s57
      %s77 = sphi 0, %s79
      %s80 = sphi 0, %s77
      %s81 = sphi 0, %s80
      %s97 = sphi 0, %s81
      %s103 = sphi 0, %s105
      %s106 = sphi 0, %s103
      %s107 = sphi 0, %s106
      %s123 = sphi 0, %s107
    $region4: #{tpu_custom_call.1} parent=1 // loop_header_branch
      %23 = sbr.rel (%p21) target = $region8
    $region5: #{tpu_custom_call.1} parent=1 // loop_body
      %s25 = ssub.s32 %s20, 1
      %s26 = ssub.s32 %s20, 2
      %s27 = sadd.s32 %s20, 1
      %s28 = ssub.s32 %s20, %s27
      %p29 = scmp.eq.s32.totalorder %s28, 0
      %s31 = sadd.s32 %s30, 1
      %s32 = scalar_select %p29, %s30, %s31
      %p35 = pneg %p29
      %p36 = scmp.eq.s32.totalorder %s20, 1
      %p37 = por %p35, %p36
      %p38 = scmp.ne.s32.totalorder %s30, %s33
      %p39 = scmp.eq.s32.totalorder %s20, 0
      %p40 = por %p38, %p39
      %p41 = scmp.ne.s32.totalorder %s30, %s33
      %p42 = scmp.eq.s32.totalorder %s25, 1
      %p43 = por %p41, %p42
      %p44 = scmp.ne.s32.totalorder %s33, %s34
      %p45 = scmp.eq.s32.totalorder %s25, 0
      %p46 = por %p44, %p45
      %p47 = scmp.ne.s32.totalorder %s33, %s34
      %p48 = scmp.eq.s32.totalorder %s26, 1
      %p49 = por %p47, %p48
      %p51 = scmp.ne.s32.totalorder %s34, %s50
      %p52 = scmp.eq.s32.totalorder %s26, 0
      %p53 = por %p51, %p52
      %s55 = sadd.s32 %s54, 1
      %p58 = scmp.eq.s32.totalorder %s20, 1
      %p59 = scmp.ne.s32.totalorder %s54, %s56
      %p60 = scmp.eq.s32.totalorder %s20, 0
      %p61 = por %p59, %p60
      %p62 = scmp.ne.s32.totalorder %s54, %s56
      %p63 = scmp.eq.s32.totalorder %s25, 1
      %p64 = por %p62, %p63
      %p65 = scmp.ne.s32.totalorder %s56, %s57
      %p66 = scmp.eq.s32.totalorder %s25, 0
      %p67 = por %p65, %p66
      %p68 = scmp.ne.s32.totalorder %s56, %s57
      %p69 = scmp.eq.s32.totalorder %s26, 1
      %p70 = por %p68, %p69
      %p72 = scmp.ne.s32.totalorder %s57, %s71
      %p73 = scmp.eq.s32.totalorder %s26, 0
      %p74 = por %p72, %p73
      %s75 = ssub.s32 %s20, %s27
      %p76 = scmp.eq.s32.totalorder %s75, 0
      %s78 = sadd.s32 %s77, 1
      %s79 = scalar_select %p76, %s77, %s78
      %p82 = pneg %p76
      %p83 = scmp.eq.s32.totalorder %s20, 1
      %p84 = por %p82, %p83
      %p85 = scmp.ne.s32.totalorder %s77, %s80
      %p86 = scmp.eq.s32.totalorder %s20, 0
      %p87 = por %p85, %p86
      %p88 = scmp.ne.s32.totalorder %s77, %s80
      %p89 = scmp.eq.s32.totalorder %s25, 1
      %p90 = por %p88, %p89
      %p91 = scmp.ne.s32.totalorder %s80, %s81
      %p92 = scmp.eq.s32.totalorder %s25, 0
      %p93 = por %p91, %p92
      %p94 = scmp.ne.s32.totalorder %s80, %s81
      %p95 = scmp.eq.s32.totalorder %s26, 1
      %p96 = por %p94, %p95
      %p98 = scmp.ne.s32.totalorder %s81, %s97
      %p99 = scmp.eq.s32.totalorder %s26, 0
      %p100 = por %p98, %p99
      %s101 = ssub.s32 %s20, %s27
      %p102 = scmp.eq.s32.totalorder %s101, 0
      %s104 = sadd.s32 %s103, 1
      %s105 = scalar_select %p102, %s103, %s104
      %p108 = pneg %p102
      %p109 = scmp.eq.s32.totalorder %s20, 1
      %p110 = por %p108, %p109
      %p111 = scmp.ne.s32.totalorder %s103, %s106
      %p112 = scmp.eq.s32.totalorder %s20, 0
      %p113 = por %p111, %p112
      %p114 = scmp.ne.s32.totalorder %s103, %s106
      %p115 = scmp.eq.s32.totalorder %s25, 1
      %p116 = por %p114, %p115
      %p117 = scmp.ne.s32.totalorder %s106, %s107
      %p118 = scmp.eq.s32.totalorder %s25, 0
      %p119 = por %p117, %p118
      %p120 = scmp.ne.s32.totalorder %s106, %s107
      %p121 = scmp.eq.s32.totalorder %s26, 1
      %p122 = por %p120, %p121
      %p124 = scmp.ne.s32.totalorder %s107, %s123
      %p125 = scmp.eq.s32.totalorder %s26, 0
      %p126 = por %p124, %p125
      %p127 = scmp.le.s32.totalorder 1, %s20
      %p128 = scmp.lt.s32.totalorder %s20, 3
      %p129 = pnand %p127, %p128
      %p130 = pneg %p129
      // Predicated region
      $region9: #{tpu_custom_call.1} parent=5 // pred_check
        _
      $region10: #{tpu_custom_call.1} parent=5 // pred_check_branch
        %132 = sbr.rel (%p129) target = $region12
      $region11: #{tpu_custom_call.1} parent=5 // pred_region
        %s133 = ssub.s32 %s20, 1
        // Predicated region
        $region13: #{tpu_custom_call.1} parent=11 // pred_check
          %p134 = pneg %p67
        $region14: #{tpu_custom_call.1} parent=11 // pred_check_branch
          %136 = sbr.rel (%p134) target = $region16
        $region15: #{tpu_custom_call.1} parent=11 // pred_region
          %s138 = ssub.s32 9216, 9216
          %139 = vsyncadd [#allocation6], %s138
          %s140 = sshll.u32 [#allocation5], 4
          %s141 = int_to_ptr.vmem [resolvable:$true] %s140
          %146 = dma.hbm_to_vmem [thread:$0]  %s1, 9216, %s141, [#allocation6], 64, 64, 4
        $region16: #{tpu_custom_call.1} parent=11 // pred_fallthru
          _
      $region12: #{tpu_custom_call.1} parent=5 // pred_fallthru
        _
      %p147 = scmp.lt.s32.totalorder %s20, 2
      // Predicated region
      $region17: #{tpu_custom_call.1} parent=5 // pred_check
        %p148 = pneg %p147
      $region18: #{tpu_custom_call.1} parent=5 // pred_check_branch
        %150 = sbr.rel (%p148) target = $region20
      $region19: #{tpu_custom_call.1} parent=5 // pred_region
        // Predicated region
        $region21: #{tpu_custom_call.1} parent=19 // pred_check
          %p151 = pneg %p40
        $region22: #{tpu_custom_call.1} parent=19 // pred_check_branch
          %153 = sbr.rel (%p151) target = $region24
        $region23: #{tpu_custom_call.1} parent=19 // pred_region
          %s154 = sand.u32 %s30, 1
          %s155 = scalar_lea.sflag [#allocation3], %s154
          %s156 = sand.u32 %s30, 1
          %s157 = smul.addr %s156, 432
          %s158 = scalar_lea.vmem [#allocation2], %s157
          %s160 = ssub.s32 6912, 6912
          %161 = vsyncadd %s155, %s160
          %s162 = smul.addr %s20, 54
          %s163 = smul.addr %s162, 128
          %s164 = scalar_lea.hbm %s0, %s163
          %s165 = sshll.u32 %s158, 4
          %s166 = int_to_ptr.vmem [resolvable:$true] %s165
          %171 = dma.hbm_to_vmem [thread:$0]  %s164, 6912, %s166, %s155, 128, 128, 8
        $region24: #{tpu_custom_call.1} parent=19 // pred_fallthru
          _
      $region20: #{tpu_custom_call.1} parent=5 // pred_fallthru
        _
      %p172 = scmp.le.s32.totalorder 1, %s20
      %p173 = scmp.lt.s32.totalorder %s20, 3
      %p174 = pnand %p172, %p173
      %p175 = pneg %p174
      // Predicated region
      $region25: #{tpu_custom_call.1} parent=5 // pred_check
        _
      $region26: #{tpu_custom_call.1} parent=5 // pred_check_branch
        %177 = sbr.rel (%p174) target = $region28
      $region27: #{tpu_custom_call.1} parent=5 // pred_region
        %s178 = ssub.s32 %s20, 1
        %s179 = sand.u32 %s33, 1
        %s180 = scalar_lea.sflag [#allocation3], %s179
        %s181 = sand.u32 %s33, 1
        %s182 = smul.addr %s181, 432
        %s183 = scalar_lea.vmem [#allocation2], %s182
        // Predicated region
        $region29: #{tpu_custom_call.1} parent=27 // pred_check
          %p184 = pneg %p46
        $region30: #{tpu_custom_call.1} parent=27 // pred_check_branch
          %186 = sbr.rel (%p184) target = $region32
        $region31: #{tpu_custom_call.1} parent=27 // pred_region
          %187 = dma.done %s180, 6912
        $region32: #{tpu_custom_call.1} parent=27 // pred_fallthru
          _
        // Predicated region
        $region33: #{tpu_custom_call.1} parent=27 // pred_check
          %p188 = pneg %p67
        $region34: #{tpu_custom_call.1} parent=27 // pred_check_branch
          %190 = sbr.rel (%p188) target = $region36
        $region35: #{tpu_custom_call.1} parent=27 // pred_region
          %191 = dma.done [#allocation6], 9216
        $region36: #{tpu_custom_call.1} parent=27 // pred_fallthru
          _
        %s192 = sand.u32 %s33, 1
        %s193 = scalar_lea.sflag [#allocation3], %s192
        %s194 = sand.u32 %s33, 1
        %s195 = smul.addr %s194, 432
        %s196 = scalar_lea.vmem [#allocation2], %s195
        %p197 = pneg %p46
        %p198 = pneg %p43
        %p199 = pneg %p67
        %p200 = pneg %p64
        %p201 = pneg %p93
        %p202 = pneg %p90
        %s203 = sand.u32 %s80, 1
        %s204 = scalar_lea.sflag [#allocation4], %s203
        %s205 = sand.u32 %s80, 1
        %s206 = smul.addr %s205, 128
        %s207 = scalar_lea.vmem [#allocation7], %s206
        %p208 = pneg %p119
        %p209 = pneg %p116
        %s210 = sand.u32 %s106, 1
        %s211 = scalar_lea.sflag [#allocation9], %s210
        %s212 = sand.u32 %s106, 1
        %s213 = smul.addr %s212, 2
        %s214 = scalar_lea.vmem [#allocation8], %s213
        %v216 = vld [vmem:[%s183] sm:$0xff]
        %v217 = vld [vmem:[%s183 + $0x8] sm:$0xff]
        %v218 = vld [vmem:[%s183 + $0x10] sm:$0x3]
        %v219 = vld [vmem:[%s183 + $0x18] sm:$0xff]
        %v220 = vld [vmem:[%s183 + $0x20] sm:$0xff]
        %v221 = vld [vmem:[%s183 + $0x28] sm:$0x3]
        %v222 = vld [vmem:[%s183 + $0x30] sm:$0xff]
        %v223 = vld [vmem:[%s183 + $0x38] sm:$0xff]
        %v224 = vld [vmem:[%s183 + $0x40] sm:$0x3]
        %v225 = vld [vmem:[%s183 + $0x48] sm:$0xff]
        %v226 = vld [vmem:[%s183 + $0x50] sm:$0xff]
        %v227 = vld [vmem:[%s183 + $0x58] sm:$0x3]
        %v228 = vld [vmem:[%s183 + $0x60] sm:$0xff]
        %v229 = vld [vmem:[%s183 + $0x68] sm:$0xff]
        %v230 = vld [vmem:[%s183 + $0x70] sm:$0x3]
        %v231 = vld [vmem:[%s183 + $0x78] sm:$0xff]
        %v232 = vld [vmem:[%s183 + $0x80] sm:$0xff]
        %v233 = vld [vmem:[%s183 + $0x88] sm:$0x3]
        %v234 = vld [vmem:[%s183 + $0x90] sm:$0xff]
        %v235 = vld [vmem:[%s183 + $0x98] sm:$0xff]
        %v236 = vld [vmem:[%s183 + $0xa0] sm:$0x3]
        %v237 = vld [vmem:[%s183 + $0xa8] sm:$0xff]
        %v238 = vld [vmem:[%s183 + $0xb0] sm:$0xff]
        %v239 = vld [vmem:[%s183 + $0xb8] sm:$0x3]
        %v240 = vld [vmem:[%s183 + $0xc0] sm:$0xff]
        %v241 = vld [vmem:[%s183 + $0xc8] sm:$0xff]
        %v242 = vld [vmem:[%s183 + $0xd0] sm:$0x3]
        %v243 = vld [vmem:[%s183 + $0xd8] sm:$0xff]
        %v244 = vld [vmem:[%s183 + $0xe0] sm:$0xff]
        %v245 = vld [vmem:[%s183 + $0xe8] sm:$0x3]
        %v246 = vld [vmem:[%s183 + $0xf0] sm:$0xff]
        %v247 = vld [vmem:[%s183 + $0xf8] sm:$0xff]
        %v248 = vld [vmem:[%s183 + $0x100] sm:$0x3]
        %v249 = vld [vmem:[%s183 + $0x108] sm:$0xff]
        %v250 = vld [vmem:[%s183 + $0x110] sm:$0xff]
        %v251 = vld [vmem:[%s183 + $0x118] sm:$0x3]
        %v252 = vld [vmem:[%s183 + $0x120] sm:$0xff]
        %v253 = vld [vmem:[%s183 + $0x128] sm:$0xff]
        %v254 = vld [vmem:[%s183 + $0x130] sm:$0x3]
        %v255 = vld [vmem:[%s183 + $0x138] sm:$0xff]
        %v256 = vld [vmem:[%s183 + $0x140] sm:$0xff]
        %v257 = vld [vmem:[%s183 + $0x148] sm:$0x3]
        %v258 = vld [vmem:[%s183 + $0x150] sm:$0xff]
        %v259 = vld [vmem:[%s183 + $0x158] sm:$0xff]
        %v260 = vld [vmem:[%s183 + $0x160] sm:$0x3]
        %v261 = vld [vmem:[%s183 + $0x168] sm:$0xff]
        %v262 = vld [vmem:[%s183 + $0x170] sm:$0xff]
        %v263 = vld [vmem:[%s183 + $0x178] sm:$0x3]
        %v264 = vld [vmem:[%s183 + $0x180] sm:$0xff]
        %v265 = vld [vmem:[%s183 + $0x188] sm:$0xff]
        %v266 = vld [vmem:[%s183 + $0x190] sm:$0x3]
        %v267 = vld [vmem:[%s183 + $0x198] sm:$0xff]
        %v268 = vld [vmem:[%s183 + $0x1a0] sm:$0xff]
        %v269 = vld [vmem:[%s183 + $0x1a8] sm:$0x3]
        %v270 = vpack.c.bf16 %v217, %v216
        %v271 = vpack.c.bf16 %v218, %v218
        %v272 = vpack.c.bf16 %v220, %v219
        %v273 = vpack.c.bf16 %v221, %v221
        %v274 = vpack.c.bf16 %v223, %v222
        %v275 = vpack.c.bf16 %v224, %v224
        %v276 = vpack.c.bf16 %v226, %v225
        %v277 = vpack.c.bf16 %v227, %v227
        %v278 = vpack.c.bf16 %v229, %v228
        %v279 = vpack.c.bf16 %v230, %v230
        %v280 = vpack.c.bf16 %v232, %v231
        %v281 = vpack.c.bf16 %v233, %v233
        %v282 = vpack.c.bf16 %v235, %v234
        %v283 = vpack.c.bf16 %v236, %v236
        %v284 = vpack.c.bf16 %v238, %v237
        %v285 = vpack.c.bf16 %v239, %v239
        %v286 = vpack.c.bf16 %v241, %v240
        %v287 = vpack.c.bf16 %v242, %v242
        %v288 = vpack.c.bf16 %v244, %v243
        %v289 = vpack.c.bf16 %v245, %v245
        %v290 = vpack.c.bf16 %v247, %v246
        %v291 = vpack.c.bf16 %v248, %v248
        %v292 = vpack.c.bf16 %v250, %v249
        %v293 = vpack.c.bf16 %v251, %v251
        %v294 = vpack.c.bf16 %v253, %v252
        %v295 = vpack.c.bf16 %v254, %v254
        %v296 = vpack.c.bf16 %v256, %v255
        %v297 = vpack.c.bf16 %v257, %v257
        %v298 = vpack.c.bf16 %v259, %v258
        %v299 = vpack.c.bf16 %v260, %v260
        %v300 = vpack.c.bf16 %v262, %v261
        %v301 = vpack.c.bf16 %v263, %v263
        %v302 = vpack.c.bf16 %v265, %v264
        %v303 = vpack.c.bf16 %v266, %v266
        %v304 = vpack.c.bf16 %v268, %v267
        %v305 = vpack.c.bf16 %v269, %v269
        %vm306 = vsmask.f32 7424
        %v308 = vshrl.u32 %v270, 16
        %v310 = vshll.u32 %v270, 16
        %v312 = vrot.slane %v310, 1
        %v313 = vor.u32 %v308, %v312
        %v315 = vshll.u32 %v271, 16
        %v317 = vrot.slane %v315, 1
        %v318 = vsel %vm306, %v313, %v317
        %v320 = vshrl.u32 %v272, 16
        %v322 = vshll.u32 %v272, 16
        %v324 = vrot.slane %v322, 1
        %v325 = vor.u32 %v320, %v324
        %v327 = vshll.u32 %v273, 16
        %v329 = vrot.slane %v327, 1
        %v330 = vsel %vm306, %v325, %v329
        %v332 = vshrl.u32 %v274, 16
        %v334 = vshll.u32 %v274, 16
        %v336 = vrot.slane %v334, 1
        %v337 = vor.u32 %v332, %v336
        %v339 = vshll.u32 %v275, 16
        %v341 = vrot.slane %v339, 1
        %v342 = vsel %vm306, %v337, %v341
        %v344 = vshrl.u32 %v276, 16
        %v346 = vshll.u32 %v276, 16
        %v348 = vrot.slane %v346, 1
        %v349 = vor.u32 %v344, %v348
        %v351 = vshll.u32 %v277, 16
        %v353 = vrot.slane %v351, 1
        %v354 = vsel %vm306, %v349, %v353
        %v356 = vshrl.u32 %v278, 16
        %v358 = vshll.u32 %v278, 16
        %v360 = vrot.slane %v358, 1
        %v361 = vor.u32 %v356, %v360
        %v363 = vshll.u32 %v279, 16
        %v365 = vrot.slane %v363, 1
        %v366 = vsel %vm306, %v361, %v365
        %v368 = vshrl.u32 %v280, 16
        %v370 = vshll.u32 %v280, 16
        %v372 = vrot.slane %v370, 1
        %v373 = vor.u32 %v368, %v372
        %v375 = vshll.u32 %v281, 16
        %v377 = vrot.slane %v375, 1
        %v378 = vsel %vm306, %v373, %v377
        %v380 = vshrl.u32 %v282, 16
        %v382 = vshll.u32 %v282, 16
        %v384 = vrot.slane %v382, 1
        %v385 = vor.u32 %v380, %v384
        %v387 = vshll.u32 %v283, 16
        %v389 = vrot.slane %v387, 1
        %v390 = vsel %vm306, %v385, %v389
        %v392 = vshrl.u32 %v284, 16
        %v394 = vshll.u32 %v284, 16
        %v396 = vrot.slane %v394, 1
        %v397 = vor.u32 %v392, %v396
        %v399 = vshll.u32 %v285, 16
        %v401 = vrot.slane %v399, 1
        %v402 = vsel %vm306, %v397, %v401
        %v404 = vshrl.u32 %v286, 16
        %v406 = vshll.u32 %v286, 16
        %v408 = vrot.slane %v406, 1
        %v409 = vor.u32 %v404, %v408
        %v411 = vshll.u32 %v287, 16
        %v413 = vrot.slane %v411, 1
        %v414 = vsel %vm306, %v409, %v413
        %v416 = vshrl.u32 %v288, 16
        %v418 = vshll.u32 %v288, 16
        %v420 = vrot.slane %v418, 1
        %v421 = vor.u32 %v416, %v420
        %v423 = vshll.u32 %v289, 16
        %v425 = vrot.slane %v423, 1
        %v426 = vsel %vm306, %v421, %v425
        %v428 = vshrl.u32 %v290, 16
        %v430 = vshll.u32 %v290, 16
        %v432 = vrot.slane %v430, 1
        %v433 = vor.u32 %v428, %v432
        %v435 = vshll.u32 %v291, 16
        %v437 = vrot.slane %v435, 1
        %v438 = vsel %vm306, %v433, %v437
        %v440 = vshrl.u32 %v292, 16
        %v442 = vshll.u32 %v292, 16
        %v444 = vrot.slane %v442, 1
        %v445 = vor.u32 %v440, %v444
        %v447 = vshll.u32 %v293, 16
        %v449 = vrot.slane %v447, 1
        %v450 = vsel %vm306, %v445, %v449
        %v452 = vshrl.u32 %v294, 16
        %v454 = vshll.u32 %v294, 16
        %v456 = vrot.slane %v454, 1
        %v457 = vor.u32 %v452, %v456
        %v459 = vshll.u32 %v295, 16
        %v461 = vrot.slane %v459, 1
        %v462 = vsel %vm306, %v457, %v461
        %v464 = vshrl.u32 %v296, 16
        %v466 = vshll.u32 %v296, 16
        %v468 = vrot.slane %v466, 1
        %v469 = vor.u32 %v464, %v468
        %v471 = vshll.u32 %v297, 16
        %v473 = vrot.slane %v471, 1
        %v474 = vsel %vm306, %v469, %v473
        %v476 = vshrl.u32 %v298, 16
        %v478 = vshll.u32 %v298, 16
        %v480 = vrot.slane %v478, 1
        %v481 = vor.u32 %v476, %v480
        %v483 = vshll.u32 %v299, 16
        %v485 = vrot.slane %v483, 1
        %v486 = vsel %vm306, %v481, %v485
        %v488 = vshrl.u32 %v300, 16
        %v490 = vshll.u32 %v300, 16
        %v492 = vrot.slane %v490, 1
        %v493 = vor.u32 %v488, %v492
        %v495 = vshll.u32 %v301, 16
        %v497 = vrot.slane %v495, 1
        %v498 = vsel %vm306, %v493, %v497
        %vm547 = vcmask 1046528
        %v548 = vrot.slane %v270, 1
        %v549 = vrot.slane %v271, 1
        %v550 = vsel %vm547, %v548, %v549
        %v551 = vrot.slane %v272, 1
        %v552 = vrot.slane %v273, 1
        %v553 = vsel %vm547, %v551, %v552
        %v554 = vrot.slane %v274, 1
        %v555 = vrot.slane %v275, 1
        %v556 = vsel %vm547, %v554, %v555
        %v557 = vrot.slane %v276, 1
        %v558 = vrot.slane %v277, 1
        %v559 = vsel %vm547, %v557, %v558
        %v560 = vrot.slane %v278, 1
        %v561 = vrot.slane %v279, 1
        %v562 = vsel %vm547, %v560, %v561
        %v563 = vrot.slane %v280, 1
        %v564 = vrot.slane %v281, 1
        %v565 = vsel %vm547, %v563, %v564
        %v566 = vrot.slane %v282, 1
        %v567 = vrot.slane %v283, 1
        %v568 = vsel %vm547, %v566, %v567
        %v569 = vrot.slane %v284, 1
        %v570 = vrot.slane %v285, 1
        %v571 = vsel %vm547, %v569, %v570
        %v572 = vrot.slane %v286, 1
        %v573 = vrot.slane %v287, 1
        %v574 = vsel %vm547, %v572, %v573
        %v575 = vrot.slane %v288, 1
        %v576 = vrot.slane %v289, 1
        %v577 = vsel %vm547, %v575, %v576
        %v578 = vrot.slane %v290, 1
        %v579 = vrot.slane %v291, 1
        %v580 = vsel %vm547, %v578, %v579
        %v581 = vrot.slane %v292, 1
        %v582 = vrot.slane %v293, 1
        %v583 = vsel %vm547, %v581, %v582
        %v584 = vrot.slane %v294, 1
        %v585 = vrot.slane %v295, 1
        %v586 = vsel %vm547, %v584, %v585
        %v587 = vrot.slane %v296, 1
        %v588 = vrot.slane %v297, 1
        %v589 = vsel %vm547, %v587, %v588
        %v590 = vrot.slane %v298, 1
        %v591 = vrot.slane %v299, 1
        %v592 = vsel %vm547, %v590, %v591
        %v593 = vrot.slane %v300, 1
        %v594 = vrot.slane %v301, 1
        %v595 = vsel %vm547, %v593, %v594
        %v612 = vld [vmem:[#allocation5] sm:$0xf]
        %v613 = vld [vmem:[#allocation5 + $0x4] sm:$0xf]
        %v614 = vld [vmem:[#allocation5 + $0x8] sm:$0xf]
        %v615 = vld [vmem:[#allocation5 + $0xc] sm:$0xf]
        %v616 = vld [vmem:[#allocation5 + $0x10] sm:$0xf]
        %v617 = vld [vmem:[#allocation5 + $0x14] sm:$0xf]
        %v618 = vld [vmem:[#allocation5 + $0x18] sm:$0xf]
        %v619 = vld [vmem:[#allocation5 + $0x1c] sm:$0xf]
        %v620 = vld [vmem:[#allocation5 + $0x20] sm:$0xf]
        %v621 = vld [vmem:[#allocation5 + $0x24] sm:$0xf]
        %v622 = vld [vmem:[#allocation5 + $0x28] sm:$0xf]
        %v623 = vld [vmem:[#allocation5 + $0x2c] sm:$0xf]
        %v624 = vld [vmem:[#allocation5 + $0x30] sm:$0xf]
        %v625 = vld [vmem:[#allocation5 + $0x34] sm:$0xf]
        %v626 = vld [vmem:[#allocation5 + $0x38] sm:$0xf]
        %v627 = vld [vmem:[#allocation5 + $0x3c] sm:$0xf]
        %v628 = vld [vmem:[#allocation5 + $0x40] sm:$0xf]
        %v629 = vld [vmem:[#allocation5 + $0x44] sm:$0xf]
        %v630 = vld [vmem:[#allocation5 + $0x48] sm:$0xf]
        %v631 = vld [vmem:[#allocation5 + $0x4c] sm:$0xf]
        %v632 = vld [vmem:[#allocation5 + $0x50] sm:$0xf]
        %v633 = vld [vmem:[#allocation5 + $0x54] sm:$0xf]
        %v634 = vld [vmem:[#allocation5 + $0x58] sm:$0xf]
        %v635 = vld [vmem:[#allocation5 + $0x5c] sm:$0xf]
        %v636 = vld [vmem:[#allocation5 + $0x60] sm:$0xf]
        %v637 = vld [vmem:[#allocation5 + $0x64] sm:$0xf]
        %v638 = vld [vmem:[#allocation5 + $0x68] sm:$0xf]
        %v639 = vld [vmem:[#allocation5 + $0x6c] sm:$0xf]
        %v640 = vld [vmem:[#allocation5 + $0x70] sm:$0xf]
        %v641 = vld [vmem:[#allocation5 + $0x74] sm:$0xf]
        %v642 = vld [vmem:[#allocation5 + $0x78] sm:$0xf]
        %v643 = vld [vmem:[#allocation5 + $0x7c] sm:$0xf]
        %v644 = vld [vmem:[#allocation5 + $0x80] sm:$0xf]
        %v645 = vld [vmem:[#allocation5 + $0x84] sm:$0xf]
        %v646 = vld [vmem:[#allocation5 + $0x88] sm:$0xf]
        %v647 = vld [vmem:[#allocation5 + $0x8c] sm:$0xf]
        %v648 = vld [vmem:[#allocation5 + $0x90] sm:$0xf]
        %v649 = vld [vmem:[#allocation5 + $0x94] sm:$0xf]
        %v650 = vld [vmem:[#allocation5 + $0x98] sm:$0xf]
        %v651 = vld [vmem:[#allocation5 + $0x9c] sm:$0xf]
        %v652 = vld [vmem:[#allocation5 + $0xa0] sm:$0xf]
        %v653 = vld [vmem:[#allocation5 + $0xa4] sm:$0xf]
        %v654 = vld [vmem:[#allocation5 + $0xa8] sm:$0xf]
        %v655 = vld [vmem:[#allocation5 + $0xac] sm:$0xf]
        %v656 = vld [vmem:[#allocation5 + $0xb0] sm:$0xf]
        %v657 = vld [vmem:[#allocation5 + $0xb4] sm:$0xf]
        %v658 = vld [vmem:[#allocation5 + $0xb8] sm:$0xf]
        %v659 = vld [vmem:[#allocation5 + $0xbc] sm:$0xf]
        %v661 = vshrl.u32 %v302, 16
        %v663 = vshll.u32 %v302, 16
        %v665 = vrot.slane %v663, 1
        %v666 = vor.u32 %v661, %v665
        %v668 = vshll.u32 %v303, 16
        %v670 = vrot.slane %v668, 1
        %v671 = vsel %vm306, %v666, %v670
        %v675 = vrot.slane %v302, 1
        %v676 = vrot.slane %v303, 1
        %v677 = vsel %vm547, %v675, %v676
        %s679 = scalar_lea.vmem [#allocation5], 192
        %v680 = vld [vmem:[%s679] sm:$0xf]
        %v681 = vld [vmem:[%s679 + $0x4] sm:$0xf]
        %v682 = vld [vmem:[%s679 + $0x8] sm:$0xf]
        %v683 = vld [vmem:[%s679 + $0xc] sm:$0xf]
        %v684 = vld [vmem:[%s679 + $0x10] sm:$0xf]
        %v685 = vld [vmem:[%s679 + $0x14] sm:$0xf]
        %v686 = vld [vmem:[%s679 + $0x18] sm:$0xf]
        %v687 = vld [vmem:[%s679 + $0x1c] sm:$0xf]
        %v688 = vld [vmem:[%s679 + $0x20] sm:$0xf]
        %v689 = vld [vmem:[%s679 + $0x24] sm:$0xf]
        %v690 = vld [vmem:[%s679 + $0x28] sm:$0xf]
        %v691 = vld [vmem:[%s679 + $0x2c] sm:$0xf]
        %v692 = vld [vmem:[%s679 + $0x30] sm:$0xf]
        %v693 = vld [vmem:[%s679 + $0x34] sm:$0xf]
        %v694 = vld [vmem:[%s679 + $0x38] sm:$0xf]
        %v695 = vld [vmem:[%s679 + $0x3c] sm:$0xf]
        %v696 = vld [vmem:[%s679 + $0x40] sm:$0xf]
        %v697 = vld [vmem:[%s679 + $0x44] sm:$0xf]
        %v698 = vld [vmem:[%s679 + $0x48] sm:$0xf]
        %v699 = vld [vmem:[%s679 + $0x4c] sm:$0xf]
        %v700 = vld [vmem:[%s679 + $0x50] sm:$0xf]
        %v701 = vld [vmem:[%s679 + $0x54] sm:$0xf]
        %v702 = vld [vmem:[%s679 + $0x58] sm:$0xf]
        %v703 = vld [vmem:[%s679 + $0x5c] sm:$0xf]
        %v704 = vld [vmem:[%s679 + $0x60] sm:$0xf]
        %v705 = vld [vmem:[%s679 + $0x64] sm:$0xf]
        %v706 = vld [vmem:[%s679 + $0x68] sm:$0xf]
        %v707 = vld [vmem:[%s679 + $0x6c] sm:$0xf]
        %v708 = vld [vmem:[%s679 + $0x70] sm:$0xf]
        %v709 = vld [vmem:[%s679 + $0x74] sm:$0xf]
        %v710 = vld [vmem:[%s679 + $0x78] sm:$0xf]
        %v711 = vld [vmem:[%s679 + $0x7c] sm:$0xf]
        %v712 = vld [vmem:[%s679 + $0x80] sm:$0xf]
        %v713 = vld [vmem:[%s679 + $0x84] sm:$0xf]
        %v714 = vld [vmem:[%s679 + $0x88] sm:$0xf]
        %v715 = vld [vmem:[%s679 + $0x8c] sm:$0xf]
        %v716 = vld [vmem:[%s679 + $0x90] sm:$0xf]
        %v717 = vld [vmem:[%s679 + $0x94] sm:$0xf]
        %v718 = vld [vmem:[%s679 + $0x98] sm:$0xf]
        %v719 = vld [vmem:[%s679 + $0x9c] sm:$0xf]
        %v720 = vld [vmem:[%s679 + $0xa0] sm:$0xf]
        %v721 = vld [vmem:[%s679 + $0xa4] sm:$0xf]
        %v722 = vld [vmem:[%s679 + $0xa8] sm:$0xf]
        %v723 = vld [vmem:[%s679 + $0xac] sm:$0xf]
        %v724 = vld [vmem:[%s679 + $0xb0] sm:$0xf]
        %v725 = vld [vmem:[%s679 + $0xb4] sm:$0xf]
        %v726 = vld [vmem:[%s679 + $0xb8] sm:$0xf]
        %v727 = vld [vmem:[%s679 + $0xbc] sm:$0xf]
        %v776 = vunpack.c.l.b16 %v680
        %v777 = vunpack.c.l.b16 %v681
        %v778 = vunpack.c.l.b16 %v682
        %v779 = vunpack.c.l.b16 %v683
        %v780 = vunpack.c.l.b16 %v684
        %v781 = vunpack.c.l.b16 %v685
        %v782 = vunpack.c.l.b16 %v686
        %v783 = vunpack.c.l.b16 %v687
        %v784 = vunpack.c.l.b16 %v688
        %v785 = vunpack.c.l.b16 %v689
        %v786 = vunpack.c.l.b16 %v690
        %v787 = vunpack.c.l.b16 %v691
        %v788 = vunpack.c.l.b16 %v692
        %v789 = vunpack.c.l.b16 %v693
        %v790 = vunpack.c.l.b16 %v694
        %v791 = vunpack.c.l.b16 %v695
        %v792 = vunpack.c.l.b16 %v696
        %v793 = vunpack.c.l.b16 %v697
        %v794 = vunpack.c.l.b16 %v698
        %v795 = vunpack.c.l.b16 %v699
        %v796 = vunpack.c.l.b16 %v700
        %v797 = vunpack.c.l.b16 %v701
        %v798 = vunpack.c.l.b16 %v702
        %v799 = vunpack.c.l.b16 %v703
        %v800 = vunpack.c.l.b16 %v704
        %v801 = vunpack.c.l.b16 %v705
        %v802 = vunpack.c.l.b16 %v706
        %v803 = vunpack.c.l.b16 %v707
        %v804 = vunpack.c.l.b16 %v708
        %v805 = vunpack.c.l.b16 %v709
        %v806 = vunpack.c.l.b16 %v710
        %v807 = vunpack.c.l.b16 %v711
        %v808 = vunpack.c.l.b16 %v712
        %v809 = vunpack.c.l.b16 %v713
        %v810 = vunpack.c.l.b16 %v714
        %v811 = vunpack.c.l.b16 %v715
        %v812 = vunpack.c.l.b16 %v716
        %v813 = vunpack.c.l.b16 %v717
        %v814 = vunpack.c.l.b16 %v718
        %v815 = vunpack.c.l.b16 %v719
        %v816 = vunpack.c.l.b16 %v720
        %v817 = vunpack.c.l.b16 %v721
        %v818 = vunpack.c.l.b16 %v722
        %v819 = vunpack.c.l.b16 %v723
        %v820 = vunpack.c.l.b16 %v724
        %v821 = vunpack.c.l.b16 %v725
        %v822 = vunpack.c.l.b16 %v726
        %v823 = vunpack.c.l.b16 %v727
        %v824 = vpack.c.b16 %v777, %v776
        %v825 = vpack.c.b16 %v779, %v778
        %v826 = vpack.c.b16 %v781, %v780
        %v827 = vpack.c.b16 %v783, %v782
        %v828 = vpack.c.b16 %v785, %v784
        %v829 = vpack.c.b16 %v787, %v786
        %v830 = vpack.c.b16 %v789, %v788
        %v831 = vpack.c.b16 %v791, %v790
        %v832 = vpack.c.b16 %v793, %v792
        %v833 = vpack.c.b16 %v795, %v794
        %v834 = vpack.c.b16 %v797, %v796
        %v835 = vpack.c.b16 %v799, %v798
        %v836 = vpack.c.b16 %v801, %v800
        %v837 = vpack.c.b16 %v803, %v802
        %v838 = vpack.c.b16 %v805, %v804
        %v839 = vpack.c.b16 %v807, %v806
        %v840 = vpack.c.b16 %v809, %v808
        %v841 = vpack.c.b16 %v811, %v810
        %v842 = vpack.c.b16 %v813, %v812
        %v843 = vpack.c.b16 %v815, %v814
        %v844 = vpack.c.b16 %v817, %v816
        %v845 = vpack.c.b16 %v819, %v818
        %v846 = vpack.c.b16 %v821, %v820
        %v847 = vpack.c.b16 %v823, %v822
        %872 = vmatprep.subr.bf16.mxu0 0
        %873 = vmatpush1.bf16.msra.mxu0 %v824
        %874 = vmatprep.subr.bf16.mxu0 0
        %875 = vmatpush1.bf16.msra.mxu0 %v825
        %876 = vmatprep.subr.bf16.mxu0 0
        %877 = vmatpush1.bf16.msra.mxu0 %v826
        %878 = vmatprep.subr.bf16.mxu0 0
        %879 = vmatpush1.bf16.msra.mxu0 %v827
        %880 = vmatprep.subr.bf16.mxu0 0
        %881 = vmatpush1.bf16.msra.mxu0 %v828
        %882 = vmatprep.subr.bf16.mxu0 0
        %883 = vmatpush1.bf16.msra.mxu0 %v829
        %884 = vmatprep.subr.bf16.mxu0 0
        %885 = vmatpush1.bf16.msra.mxu0 %v830
        %886 = vmatprep.subr.bf16.mxu0 0
        %887 = vmatpush1.bf16.msra.mxu0 %v831
        %888 = vmatprep.subr.bf16.mxu0 0
        %889 = vmatpush1.bf16.msra.mxu0 %v832
        %890 = vmatprep.subr.bf16.mxu0 0
        %891 = vmatpush1.bf16.msra.mxu0 %v833
        %892 = vmatprep.subr.bf16.mxu0 0
        %893 = vmatpush1.bf16.msra.mxu0 %v834
        %894 = vmatprep.subr.bf16.mxu0 0
        %895 = vmatpush1.bf16.msra.mxu0 %v835
        %896 = vmatprep.subr.bf16.mxu0 0
        %897 = vmatpush1.bf16.msra.mxu0 %v836
        %898 = vmatprep.subr.bf16.mxu0 0
        %899 = vmatpush1.bf16.msra.mxu0 %v837
        %900 = vmatprep.subr.bf16.mxu0 0
        %901 = vmatpush1.bf16.msra.mxu0 %v838
        %902 = vmatprep.subr.bf16.mxu0 0
        %903 = vmatpush1.bf16.msra.mxu0 %v839
        %904 = vmatprep.mubr.bf16.mxu0 %v330
        %905 = vmatmul.mubr.bf16.gmra.mrb[0].mxu0 %v272
        %v906 = vpop.f32.mrb[0].mxu0
        %v907 = vadd.f32 0.0, %v906
        %v908 = vpop.f32.mrb[0].mxu0
        %v909 = vpop.f32.mrb[0].mxu0
        %v910 = vadd.f32 0.0, %v909
        %v911 = vpop.f32.mrb[0].mxu0
        %912 = vmatprep.mubr.bf16.mxu0 %v342
        %913 = vmatmul.mubr.bf16.gmra.mrb[0].mxu0 %v274
        %v914 = vpop.f32.mrb[0].mxu0
        %v915 = vadd.f32 0.0, %v914
        %v916 = vpop.f32.mrb[0].mxu0
        %v917 = vpop.f32.mrb[0].mxu0
        %v918 = vadd.f32 0.0, %v917
        %v919 = vpop.f32.mrb[0].mxu0
        %920 = vmatprep.mubr.bf16.mxu0 %v354
        %921 = vmatmul.mubr.bf16.gmra.mrb[0].mxu0 %v276
        %v922 = vpop.f32.mrb[0].mxu0
        %v923 = vadd.f32 0.0, %v922
        %v924 = vpop.f32.mrb[0].mxu0
        %v925 = vpop.f32.mrb[0].mxu0
        %v926 = vadd.f32 0.0, %v925
        %v927 = vpop.f32.mrb[0].mxu0
        %928 = vmatprep.mubr.bf16.mxu0 %v366
        %929 = vmatmul.mubr.bf16.gmra.mrb[0].mxu0 %v278
        %v930 = vpop.f32.mrb[0].mxu0
        %v931 = vadd.f32 0.0, %v930
        %v932 = vpop.f32.mrb[0].mxu0
        %v933 = vpop.f32.mrb[0].mxu0
        %v934 = vadd.f32 0.0, %v933
        %v935 = vpop.f32.mrb[0].mxu0
        %936 = vmatprep.mubr.bf16.mxu0 %v378
        %937 = vmatmul.mubr.bf16.gmra.mrb[0].mxu0 %v280
        %v938 = vpop.f32.mrb[0].mxu0
        %v939 = vadd.f32 0.0, %v938
        %v940 = vpop.f32.mrb[0].mxu0
        %v941 = vpop.f32.mrb[0].mxu0
        %v942 = vadd.f32 0.0, %v941
        %v943 = vpop.f32.mrb[0].mxu0
        %944 = vmatprep.mubr.bf16.mxu0 %v390
        %945 = vmatmul.mubr.bf16.gmra.mrb[0].mxu0 %v282
        %v946 = vpop.f32.mrb[0].mxu0
        %v947 = vadd.f32 0.0, %v946
        %v948 = vpop.f32.mrb[0].mxu0
        %v949 = vpop.f32.mrb[0].mxu0
        %v950 = vadd.f32 0.0, %v949
        %v951 = vpop.f32.mrb[0].mxu0
        %952 = vmatprep.mubr.bf16.mxu0 %v402
        %953 = vmatmul.mubr.bf16.gmra.mrb[0].mxu0 %v284
        %v954 = vpop.f32.mrb[0].mxu0
        %v955 = vadd.f32 0.0, %v954
        %v956 = vpop.f32.mrb[0].mxu0
        %v957 = vpop.f32.mrb[0].mxu0
        %v958 = vadd.f32 0.0, %v957
        %v959 = vpop.f32.mrb[0].mxu0
        %960 = vmatprep.mubr.bf16.mxu0 %v414
        %961 = vmatmul.mubr.bf16.gmra.mrb[0].mxu0 %v286
        %v962 = vpop.f32.mrb[0].mxu0
        %v963 = vadd.f32 0.0, %v962
        %v964 = vpop.f32.mrb[0].mxu0
        %v965 = vpop.f32.mrb[0].mxu0
        %v966 = vadd.f32 0.0, %v965
        %v967 = vpop.f32.mrb[0].mxu0
        %968 = vmatprep.mubr.bf16.mxu0 %v426
        %969 = vmatmul.mubr.bf16.gmra.mrb[0].mxu0 %v288
        %v970 = vpop.f32.mrb[0].mxu0
        %v971 = vadd.f32 0.0, %v970
        %v972 = vpop.f32.mrb[0].mxu0
        %v973 = vpop.f32.mrb[0].mxu0
        %v974 = vadd.f32 0.0, %v973
        %v975 = vpop.f32.mrb[0].mxu0
        %976 = vmatprep.mubr.bf16.mxu0 %v438
        %977 = vmatmul.mubr.bf16.gmra.mrb[0].mxu0 %v290
        %v978 = vpop.f32.mrb[0].mxu0
        %v979 = vadd.f32 0.0, %v978
        %v980 = vpop.f32.mrb[0].mxu0
        %v981 = vpop.f32.mrb[0].mxu0
        %v982 = vadd.f32 0.0, %v981
        %v983 = vpop.f32.mrb[0].mxu0
        %984 = vmatprep.mubr.bf16.mxu0 %v450
        %985 = vmatmul.mubr.bf16.gmra.mrb[0].mxu0 %v292
        %v986 = vpop.f32.mrb[0].mxu0
        %v987 = vadd.f32 0.0, %v986
        %v988 = vpop.f32.mrb[0].mxu0
        %v989 = vpop.f32.mrb[0].mxu0
        %v990 = vadd.f32 0.0, %v989
        %v991 = vpop.f32.mrb[0].mxu0
        %992 = vmatprep.mubr.bf16.mxu0 %v462
        %993 = vmatmul.mubr.bf16.gmra.mrb[0].mxu0 %v294
        %v994 = vpop.f32.mrb[0].mxu0
        %v995 = vadd.f32 0.0, %v994
        %v996 = vpop.f32.mrb[0].mxu0
        %v997 = vpop.f32.mrb[0].mxu0
        %v998 = vadd.f32 0.0, %v997
        %v999 = vpop.f32.mrb[0].mxu0
        %1000 = vmatprep.mubr.bf16.mxu0 %v474
        %1001 = vmatmul.mubr.bf16.gmra.mrb[0].mxu0 %v296
        %v1002 = vpop.f32.mrb[0].mxu0
        %v1003 = vadd.f32 0.0, %v1002
        %v1004 = vpop.f32.mrb[0].mxu0
        %v1005 = vpop.f32.mrb[0].mxu0
        %v1006 = vadd.f32 0.0, %v1005
        %v1007 = vpop.f32.mrb[0].mxu0
        %1008 = vmatprep.mubr.bf16.mxu0 %v486
        %1009 = vmatmul.mubr.bf16.gmra.mrb[0].mxu0 %v298
        %v1010 = vpop.f32.mrb[0].mxu0
        %v1011 = vadd.f32 0.0, %v1010
        %v1012 = vpop.f32.mrb[0].mxu0
        %v1013 = vpop.f32.mrb[0].mxu0
        %v1014 = vadd.f32 0.0, %v1013
        %v1015 = vpop.f32.mrb[0].mxu0
        %1016 = vmatprep.mubr.bf16.mxu0 %v498
        %1017 = vmatmul.mubr.bf16.gmra.mrb[0].mxu0 %v300
        %v1018 = vpop.f32.mrb[0].mxu0
        %v1019 = vadd.f32 0.0, %v1018
        %v1020 = vpop.f32.mrb[0].mxu0
        %v1021 = vpop.f32.mrb[0].mxu0
        %v1022 = vadd.f32 0.0, %v1021
        %v1023 = vpop.f32.mrb[0].mxu0
        %1024 = vmatprep.mubr.bf16.mxu0 %v671
        %1025 = vmatmul.mubr.bf16.gmra.mrb[0].mxu0 %v302
        %v1026 = vpop.f32.mrb[0].mxu0
        %v1027 = vadd.f32 0.0, %v1026
        %v1028 = vpop.f32.mrb[0].mxu0
        %v1029 = vpop.f32.mrb[0].mxu0
        %v1030 = vadd.f32 0.0, %v1029
        %v1031 = vpop.f32.mrb[0].mxu0
        %1032 = vdwg.mxu0
        %1033 = vmatprep.subr.bf16.mxu0 0
        %1034 = vmatpush1.bf16.msra.mxu0 %v840
        %1035 = vmatprep.subr.bf16.mxu0 0
        %1036 = vmatpush1.bf16.msra.mxu0 %v841
        %1037 = vmatprep.subr.bf16.mxu0 0
        %1038 = vmatpush1.bf16.msra.mxu0 %v842
        %1039 = vmatprep.subr.bf16.mxu0 0
        %1040 = vmatpush1.bf16.msra.mxu0 %v843
        %1041 = vmatprep.subr.bf16.mxu0 0
        %1042 = vmatpush1.bf16.msra.mxu0 %v844
        %1043 = vmatprep.subr.bf16.mxu0 0
        %1044 = vmatpush1.bf16.msra.mxu0 %v845
        %1045 = vmatprep.subr.bf16.mxu0 0
        %1046 = vmatpush1.bf16.msra.mxu0 %v846
        %1047 = vmatprep.subr.bf16.mxu0 0
        %1048 = vmatpush1.bf16.msra.mxu0 %v847
        %1049 = vmatprep.subr.bf16.mxu0 0
        %1050 = vmatpush1.bf16.msra.mxu0 0
        %1051 = vmatprep.subr.bf16.mxu0 0
        %1052 = vmatpush1.bf16.msra.mxu0 0
        %1053 = vmatprep.subr.bf16.mxu0 0
        %1054 = vmatpush1.bf16.msra.mxu0 0
        %1055 = vmatprep.subr.bf16.mxu0 0
        %1056 = vmatpush1.bf16.msra.mxu0 0
        %1057 = vmatprep.subr.bf16.mxu0 0
        %1058 = vmatpush1.bf16.msra.mxu0 0
        %1059 = vmatprep.subr.bf16.mxu0 0
        %1060 = vmatpush1.bf16.msra.mxu0 0
        %1061 = vmatprep.subr.bf16.mxu0 0
        %1062 = vmatpush1.bf16.msra.mxu0 0
        %1063 = vmatprep.subr.bf16.mxu0 0
        %1064 = vmatpush1.bf16.msra.mxu0 0
        %1065 = vmatprep.mubr.bf16.mxu0 0
        %1066 = vmatmul.mubr.bf16.gmra.mrb[0].mxu0 %v553
        %v1067 = vpop.f32.mrb[0].mxu0
        %v1068 = vadd.f32 %v907, %v1067
        %v1069 = vpop.f32.mrb[0].mxu0
        %v1070 = vpop.f32.mrb[0].mxu0
        %v1071 = vadd.f32 %v910, %v1070
        %v1072 = vpop.f32.mrb[0].mxu0
        %1073 = vmatprep.mubr.bf16.mxu0 0
        %1074 = vmatmul.mubr.bf16.gmra.mrb[0].mxu0 %v556
        %v1075 = vpop.f32.mrb[0].mxu0
        %v1076 = vadd.f32 %v915, %v1075
        %v1077 = vpop.f32.mrb[0].mxu0
        %v1078 = vpop.f32.mrb[0].mxu0
        %v1079 = vadd.f32 %v918, %v1078
        %v1080 = vpop.f32.mrb[0].mxu0
        %1081 = vmatprep.mubr.bf16.mxu0 0
        %1082 = vmatmul.mubr.bf16.gmra.mrb[0].mxu0 %v559
        %v1083 = vpop.f32.mrb[0].mxu0
        %v1084 = vadd.f32 %v923, %v1083
        %v1085 = vpop.f32.mrb[0].mxu0
        %v1086 = vpop.f32.mrb[0].mxu0
        %v1087 = vadd.f32 %v926, %v1086
        %v1088 = vpop.f32.mrb[0].mxu0
        %1089 = vmatprep.mubr.bf16.mxu0 0
        %1090 = vmatmul.mubr.bf16.gmra.mrb[0].mxu0 %v562
        %v1091 = vpop.f32.mrb[0].mxu0
        %v1092 = vadd.f32 %v931, %v1091
        %v1093 = vpop.f32.mrb[0].mxu0
        %v1094 = vpop.f32.mrb[0].mxu0
        %v1095 = vadd.f32 %v934, %v1094
        %v1096 = vpop.f32.mrb[0].mxu0
        %1097 = vmatprep.mubr.bf16.mxu0 0
        %1098 = vmatmul.mubr.bf16.gmra.mrb[0].mxu0 %v565
        %v1099 = vpop.f32.mrb[0].mxu0
        %v1100 = vadd.f32 %v939, %v1099
        %v1101 = vpop.f32.mrb[0].mxu0
        %v1102 = vpop.f32.mrb[0].mxu0
        %v1103 = vadd.f32 %v942, %v1102
        %v1104 = vpop.f32.mrb[0].mxu0
        %1105 = vmatprep.mubr.bf16.mxu0 0
        %1106 = vmatmul.mubr.bf16.gmra.mrb[0].mxu0 %v568
        %v1107 = vpop.f32.mrb[0].mxu0
        %v1108 = vadd.f32 %v947, %v1107
        %v1109 = vpop.f32.mrb[0].mxu0
        %v1110 = vpop.f32.mrb[0].mxu0
        %v1111 = vadd.f32 %v950, %v1110
        %v1112 = vpop.f32.mrb[0].mxu0
        %1113 = vmatprep.mubr.bf16.mxu0 0
        %1114 = vmatmul.mubr.bf16.gmra.mrb[0].mxu0 %v571
        %v1115 = vpop.f32.mrb[0].mxu0
        %v1116 = vadd.f32 %v955, %v1115
        %v1117 = vpop.f32.mrb[0].mxu0
        %v1118 = vpop.f32.mrb[0].mxu0
        %v1119 = vadd.f32 %v958, %v1118
        %v1120 = vpop.f32.mrb[0].mxu0
        %1121 = vmatprep.mubr.bf16.mxu0 0
        %1122 = vmatmul.mubr.bf16.gmra.mrb[0].mxu0 %v574
        %v1123 = vpop.f32.mrb[0].mxu0
        %v1124 = vadd.f32 %v963, %v1123
        %v1125 = vpop.f32.mrb[0].mxu0
        %v1126 = vpop.f32.mrb[0].mxu0
        %v1127 = vadd.f32 %v966, %v1126
        %v1128 = vpop.f32.mrb[0].mxu0
        %1129 = vmatprep.mubr.bf16.mxu0 0
        %1130 = vmatmul.mubr.bf16.gmra.mrb[0].mxu0 %v577
        %v1131 = vpop.f32.mrb[0].mxu0
        %v1132 = vadd.f32 %v971, %v1131
        %v1133 = vpop.f32.mrb[0].mxu0
        %v1134 = vpop.f32.mrb[0].mxu0
        %v1135 = vadd.f32 %v974, %v1134
        %v1136 = vpop.f32.mrb[0].mxu0
        %1137 = vmatprep.mubr.bf16.mxu0 0
        %1138 = vmatmul.mubr.bf16.gmra.mrb[0].mxu0 %v580
        %v1139 = vpop.f32.mrb[0].mxu0
        %v1140 = vadd.f32 %v979, %v1139
        %v1141 = vpop.f32.mrb[0].mxu0
        %v1142 = vpop.f32.mrb[0].mxu0
        %v1143 = vadd.f32 %v982, %v1142
        %v1144 = vpop.f32.mrb[0].mxu0
        %1145 = vmatprep.mubr.bf16.mxu0 0
        %1146 = vmatmul.mubr.bf16.gmra.mrb[0].mxu0 %v583
        %v1147 = vpop.f32.mrb[0].mxu0
        %v1148 = vadd.f32 %v987, %v1147
        %v1149 = vpop.f32.mrb[0].mxu0
        %v1150 = vpop.f32.mrb[0].mxu0
        %v1151 = vadd.f32 %v990, %v1150
        %v1152 = vpop.f32.mrb[0].mxu0
        %1153 = vmatprep.mubr.bf16.mxu0 0
        %1154 = vmatmul.mubr.bf16.gmra.mrb[0].mxu0 %v586
        %v1155 = vpop.f32.mrb[0].mxu0
        %v1156 = vadd.f32 %v995, %v1155
        %v1157 = vpop.f32.mrb[0].mxu0
        %v1158 = vpop.f32.mrb[0].mxu0
        %v1159 = vadd.f32 %v998, %v1158
        %v1160 = vpop.f32.mrb[0].mxu0
        %1161 = vmatprep.mubr.bf16.mxu0 0
        %1162 = vmatmul.mubr.bf16.gmra.mrb[0].mxu0 %v589
        %v1163 = vpop.f32.mrb[0].mxu0
        %v1164 = vadd.f32 %v1003, %v1163
        %v1165 = vpop.f32.mrb[0].mxu0
        %v1166 = vpop.f32.mrb[0].mxu0
        %v1167 = vadd.f32 %v1006, %v1166
        %v1168 = vpop.f32.mrb[0].mxu0
        %1169 = vmatprep.mubr.bf16.mxu0 0
        %1170 = vmatmul.mubr.bf16.gmra.mrb[0].mxu0 %v592
        %v1171 = vpop.f32.mrb[0].mxu0
        %v1172 = vadd.f32 %v1011, %v1171
        %v1173 = vpop.f32.mrb[0].mxu0
        %v1174 = vpop.f32.mrb[0].mxu0
        %v1175 = vadd.f32 %v1014, %v1174
        %v1176 = vpop.f32.mrb[0].mxu0
        %1177 = vmatprep.mubr.bf16.mxu0 0
        %1178 = vmatmul.mubr.bf16.gmra.mrb[0].mxu0 %v595
        %v1179 = vpop.f32.mrb[0].mxu0
        %v1180 = vadd.f32 %v1019, %v1179
        %v1181 = vpop.f32.mrb[0].mxu0
        %v1182 = vpop.f32.mrb[0].mxu0
        %v1183 = vadd.f32 %v1022, %v1182
        %v1184 = vpop.f32.mrb[0].mxu0
        %1185 = vmatprep.mubr.bf16.mxu0 0
        %1186 = vmatmul.mubr.bf16.gmra.mrb[0].mxu0 %v677
        %v1187 = vpop.f32.mrb[0].mxu0
        %v1188 = vadd.f32 %v1027, %v1187
        %v1189 = vpop.f32.mrb[0].mxu0
        %v1190 = vpop.f32.mrb[0].mxu0
        %v1191 = vadd.f32 %v1030, %v1190
        %v1192 = vpop.f32.mrb[0].mxu0
        %1193 = vdwg.mxu0
        %v1242 = vunpack.c.l.b16 %v612
        %v1243 = vunpack.c.l.b16 %v613
        %v1244 = vunpack.c.l.b16 %v614
        %v1245 = vunpack.c.l.b16 %v615
        %v1246 = vunpack.c.l.b16 %v616
        %v1247 = vunpack.c.l.b16 %v617
        %v1248 = vunpack.c.l.b16 %v618
        %v1249 = vunpack.c.l.b16 %v619
        %v1250 = vunpack.c.l.b16 %v620
        %v1251 = vunpack.c.l.b16 %v621
        %v1252 = vunpack.c.l.b16 %v622
        %v1253 = vunpack.c.l.b16 %v623
        %v1254 = vunpack.c.l.b16 %v624
        %v1255 = vunpack.c.l.b16 %v625
        %v1256 = vunpack.c.l.b16 %v626
        %v1257 = vunpack.c.l.b16 %v627
        %v1258 = vunpack.c.l.b16 %v628
        %v1259 = vunpack.c.l.b16 %v629
        %v1260 = vunpack.c.l.b16 %v630
        %v1261 = vunpack.c.l.b16 %v631
        %v1262 = vunpack.c.l.b16 %v632
        %v1263 = vunpack.c.l.b16 %v633
        %v1264 = vunpack.c.l.b16 %v634
        %v1265 = vunpack.c.l.b16 %v635
        %v1266 = vunpack.c.l.b16 %v636
        %v1267 = vunpack.c.l.b16 %v637
        %v1268 = vunpack.c.l.b16 %v638
        %v1269 = vunpack.c.l.b16 %v639
        %v1270 = vunpack.c.l.b16 %v640
        %v1271 = vunpack.c.l.b16 %v641
        %v1272 = vunpack.c.l.b16 %v642
        %v1273 = vunpack.c.l.b16 %v643
        %v1274 = vunpack.c.l.b16 %v644
        %v1275 = vunpack.c.l.b16 %v645
        %v1276 = vunpack.c.l.b16 %v646
        %v1277 = vunpack.c.l.b16 %v647
        %v1278 = vunpack.c.l.b16 %v648
        %v1279 = vunpack.c.l.b16 %v649
        %v1280 = vunpack.c.l.b16 %v650
        %v1281 = vunpack.c.l.b16 %v651
        %v1282 = vunpack.c.l.b16 %v652
        %v1283 = vunpack.c.l.b16 %v653
        %v1284 = vunpack.c.l.b16 %v654
        %v1285 = vunpack.c.l.b16 %v655
        %v1286 = vunpack.c.l.b16 %v656
        %v1287 = vunpack.c.l.b16 %v657
        %v1288 = vunpack.c.l.b16 %v658
        %v1289 = vunpack.c.l.b16 %v659
        %v1290 = vpack.c.b16 %v1243, %v1242
        %v1291 = vpack.c.b16 %v1245, %v1244
        %v1292 = vpack.c.b16 %v1247, %v1246
        %v1293 = vpack.c.b16 %v1249, %v1248
        %v1294 = vpack.c.b16 %v1251, %v1250
        %v1295 = vpack.c.b16 %v1253, %v1252
        %v1296 = vpack.c.b16 %v1255, %v1254
        %v1297 = vpack.c.b16 %v1257, %v1256
        %v1298 = vpack.c.b16 %v1259, %v1258
        %v1299 = vpack.c.b16 %v1261, %v1260
        %v1300 = vpack.c.b16 %v1263, %v1262
        %v1301 = vpack.c.b16 %v1265, %v1264
        %v1302 = vpack.c.b16 %v1267, %v1266
        %v1303 = vpack.c.b16 %v1269, %v1268
        %v1304 = vpack.c.b16 %v1271, %v1270
        %v1305 = vpack.c.b16 %v1273, %v1272
        %v1306 = vpack.c.b16 %v1275, %v1274
        %v1307 = vpack.c.b16 %v1277, %v1276
        %v1308 = vpack.c.b16 %v1279, %v1278
        %v1309 = vpack.c.b16 %v1281, %v1280
        %v1310 = vpack.c.b16 %v1283, %v1282
        %v1311 = vpack.c.b16 %v1285, %v1284
        %v1312 = vpack.c.b16 %v1287, %v1286
        %v1313 = vpack.c.b16 %v1289, %v1288
        %1338 = vmatprep.subr.bf16.mxu0 0
        %1339 = vmatpush1.bf16.msra.mxu0 %v1290
        %1340 = vmatprep.subr.bf16.mxu0 0
        %1341 = vmatpush1.bf16.msra.mxu0 %v1291
        %1342 = vmatprep.subr.bf16.mxu0 0
        %1343 = vmatpush1.bf16.msra.mxu0 %v1292
        %1344 = vmatprep.subr.bf16.mxu0 0
        %1345 = vmatpush1.bf16.msra.mxu0 %v1293
        %1346 = vmatprep.subr.bf16.mxu0 0
        %1347 = vmatpush1.bf16.msra.mxu0 %v1294
        %1348 = vmatprep.subr.bf16.mxu0 0
        %1349 = vmatpush1.bf16.msra.mxu0 %v1295
        %1350 = vmatprep.subr.bf16.mxu0 0
        %1351 = vmatpush1.bf16.msra.mxu0 %v1296
        %1352 = vmatprep.subr.bf16.mxu0 0
        %1353 = vmatpush1.bf16.msra.mxu0 %v1297
        %1354 = vmatprep.subr.bf16.mxu0 0
        %1355 = vmatpush1.bf16.msra.mxu0 %v1298
        %1356 = vmatprep.subr.bf16.mxu0 0
        %1357 = vmatpush1.bf16.msra.mxu0 %v1299
        %1358 = vmatprep.subr.bf16.mxu0 0
        %1359 = vmatpush1.bf16.msra.mxu0 %v1300
        %1360 = vmatprep.subr.bf16.mxu0 0
        %1361 = vmatpush1.bf16.msra.mxu0 %v1301
        %1362 = vmatprep.subr.bf16.mxu0 0
        %1363 = vmatpush1.bf16.msra.mxu0 %v1302
        %1364 = vmatprep.subr.bf16.mxu0 0
        %1365 = vmatpush1.bf16.msra.mxu0 %v1303
        %1366 = vmatprep.subr.bf16.mxu0 0
        %1367 = vmatpush1.bf16.msra.mxu0 %v1304
        %1368 = vmatprep.subr.bf16.mxu0 0
        %1369 = vmatpush1.bf16.msra.mxu0 %v1305
        %1370 = vmatprep.mubr.bf16.mxu0 %v318
        %1371 = vmatmul.mubr.bf16.gmra.mrb[0].mxu0 %v270
        %v1372 = vpop.f32.mrb[0].mxu0
        %v1373 = vadd.f32 %v1068, %v1372
        %v1374 = vpop.f32.mrb[0].mxu0
        %v1375 = vpop.f32.mrb[0].mxu0
        %v1376 = vadd.f32 %v1071, %v1375
        %v1377 = vpop.f32.mrb[0].mxu0
        %1378 = vmatprep.mubr.bf16.mxu0 %v330
        %1379 = vmatmul.mubr.bf16.gmra.mrb[0].mxu0 %v272
        %v1380 = vpop.f32.mrb[0].mxu0
        %v1381 = vadd.f32 %v1076, %v1380
        %v1382 = vpop.f32.mrb[0].mxu0
        %v1383 = vpop.f32.mrb[0].mxu0
        %v1384 = vadd.f32 %v1079, %v1383
        %v1385 = vpop.f32.mrb[0].mxu0
        %1386 = vmatprep.mubr.bf16.mxu0 %v342
        %1387 = vmatmul.mubr.bf16.gmra.mrb[0].mxu0 %v274
        %v1388 = vpop.f32.mrb[0].mxu0
        %v1389 = vadd.f32 %v1084, %v1388
        %v1390 = vpop.f32.mrb[0].mxu0
        %v1391 = vpop.f32.mrb[0].mxu0
        %v1392 = vadd.f32 %v1087, %v1391
        %v1393 = vpop.f32.mrb[0].mxu0
        %1394 = vmatprep.mubr.bf16.mxu0 %v354
        %1395 = vmatmul.mubr.bf16.gmra.mrb[0].mxu0 %v276
        %v1396 = vpop.f32.mrb[0].mxu0
        %v1397 = vadd.f32 %v1092, %v1396
        %v1398 = vpop.f32.mrb[0].mxu0
        %v1399 = vpop.f32.mrb[0].mxu0
        %v1400 = vadd.f32 %v1095, %v1399
        %v1401 = vpop.f32.mrb[0].mxu0
        %1402 = vmatprep.mubr.bf16.mxu0 %v366
        %1403 = vmatmul.mubr.bf16.gmra.mrb[0].mxu0 %v278
        %v1404 = vpop.f32.mrb[0].mxu0
        %v1405 = vadd.f32 %v1100, %v1404
        %v1406 = vpop.f32.mrb[0].mxu0
        %v1407 = vpop.f32.mrb[0].mxu0
        %v1408 = vadd.f32 %v1103, %v1407
        %v1409 = vpop.f32.mrb[0].mxu0
        %1410 = vmatprep.mubr.bf16.mxu0 %v378
        %1411 = vmatmul.mubr.bf16.gmra.mrb[0].mxu0 %v280
        %v1412 = vpop.f32.mrb[0].mxu0
        %v1413 = vadd.f32 %v1108, %v1412
        %v1414 = vpop.f32.mrb[0].mxu0
        %v1415 = vpop.f32.mrb[0].mxu0
        %v1416 = vadd.f32 %v1111, %v1415
        %v1417 = vpop.f32.mrb[0].mxu0
        %1418 = vmatprep.mubr.bf16.mxu0 %v390
        %1419 = vmatmul.mubr.bf16.gmra.mrb[0].mxu0 %v282
        %v1420 = vpop.f32.mrb[0].mxu0
        %v1421 = vadd.f32 %v1116, %v1420
        %v1422 = vpop.f32.mrb[0].mxu0
        %v1423 = vpop.f32.mrb[0].mxu0
        %v1424 = vadd.f32 %v1119, %v1423
        %v1425 = vpop.f32.mrb[0].mxu0
        %1426 = vmatprep.mubr.bf16.mxu0 %v402
        %1427 = vmatmul.mubr.bf16.gmra.mrb[0].mxu0 %v284
        %v1428 = vpop.f32.mrb[0].mxu0
        %v1429 = vadd.f32 %v1124, %v1428
        %v1430 = vpop.f32.mrb[0].mxu0
        %v1431 = vpop.f32.mrb[0].mxu0
        %v1432 = vadd.f32 %v1127, %v1431
        %v1433 = vpop.f32.mrb[0].mxu0
        %1434 = vmatprep.mubr.bf16.mxu0 %v414
        %1435 = vmatmul.mubr.bf16.gmra.mrb[0].mxu0 %v286
        %v1436 = vpop.f32.mrb[0].mxu0
        %v1437 = vadd.f32 %v1132, %v1436
        %v1438 = vpop.f32.mrb[0].mxu0
        %v1439 = vpop.f32.mrb[0].mxu0
        %v1440 = vadd.f32 %v1135, %v1439
        %v1441 = vpop.f32.mrb[0].mxu0
        %1442 = vmatprep.mubr.bf16.mxu0 %v426
        %1443 = vmatmul.mubr.bf16.gmra.mrb[0].mxu0 %v288
        %v1444 = vpop.f32.mrb[0].mxu0
        %v1445 = vadd.f32 %v1140, %v1444
        %v1446 = vpop.f32.mrb[0].mxu0
        %v1447 = vpop.f32.mrb[0].mxu0
        %v1448 = vadd.f32 %v1143, %v1447
        %v1449 = vpop.f32.mrb[0].mxu0
        %1450 = vmatprep.mubr.bf16.mxu0 %v438
        %1451 = vmatmul.mubr.bf16.gmra.mrb[0].mxu0 %v290
        %v1452 = vpop.f32.mrb[0].mxu0
        %v1453 = vadd.f32 %v1148, %v1452
        %v1454 = vpop.f32.mrb[0].mxu0
        %v1455 = vpop.f32.mrb[0].mxu0
        %v1456 = vadd.f32 %v1151, %v1455
        %v1457 = vpop.f32.mrb[0].mxu0
        %1458 = vmatprep.mubr.bf16.mxu0 %v450
        %1459 = vmatmul.mubr.bf16.gmra.mrb[0].mxu0 %v292
        %v1460 = vpop.f32.mrb[0].mxu0
        %v1461 = vadd.f32 %v1156, %v1460
        %v1462 = vpop.f32.mrb[0].mxu0
        %v1463 = vpop.f32.mrb[0].mxu0
        %v1464 = vadd.f32 %v1159, %v1463
        %v1465 = vpop.f32.mrb[0].mxu0
        %1466 = vmatprep.mubr.bf16.mxu0 %v462
        %1467 = vmatmul.mubr.bf16.gmra.mrb[0].mxu0 %v294
        %v1468 = vpop.f32.mrb[0].mxu0
        %v1469 = vadd.f32 %v1164, %v1468
        %v1470 = vpop.f32.mrb[0].mxu0
        %v1471 = vpop.f32.mrb[0].mxu0
        %v1472 = vadd.f32 %v1167, %v1471
        %v1473 = vpop.f32.mrb[0].mxu0
        %1474 = vmatprep.mubr.bf16.mxu0 %v474
        %1475 = vmatmul.mubr.bf16.gmra.mrb[0].mxu0 %v296
        %v1476 = vpop.f32.mrb[0].mxu0
        %v1477 = vadd.f32 %v1172, %v1476
        %v1478 = vpop.f32.mrb[0].mxu0
        %v1479 = vpop.f32.mrb[0].mxu0
        %v1480 = vadd.f32 %v1175, %v1479
        %v1481 = vpop.f32.mrb[0].mxu0
        %1482 = vmatprep.mubr.bf16.mxu0 %v486
        %1483 = vmatmul.mubr.bf16.gmra.mrb[0].mxu0 %v298
        %v1484 = vpop.f32.mrb[0].mxu0
        %v1485 = vadd.f32 %v1180, %v1484
        %v1486 = vpop.f32.mrb[0].mxu0
        %v1487 = vpop.f32.mrb[0].mxu0
        %v1488 = vadd.f32 %v1183, %v1487
        %v1489 = vpop.f32.mrb[0].mxu0
        %1490 = vmatprep.mubr.bf16.mxu0 %v498
        %1491 = vmatmul.mubr.bf16.gmra.mrb[0].mxu0 %v300
        %v1492 = vpop.f32.mrb[0].mxu0
        %v1493 = vadd.f32 %v1188, %v1492
        %v1494 = vpop.f32.mrb[0].mxu0
        %v1495 = vpop.f32.mrb[0].mxu0
        %v1496 = vadd.f32 %v1191, %v1495
        %v1497 = vpop.f32.mrb[0].mxu0
        %1498 = vdwg.mxu0
        %1499 = vmatprep.subr.bf16.mxu0 0
        %1500 = vmatpush1.bf16.msra.mxu0 %v1306
        %1501 = vmatprep.subr.bf16.mxu0 0
        %1502 = vmatpush1.bf16.msra.mxu0 %v1307
        %1503 = vmatprep.subr.bf16.mxu0 0
        %1504 = vmatpush1.bf16.msra.mxu0 %v1308
        %1505 = vmatprep.subr.bf16.mxu0 0
        %1506 = vmatpush1.bf16.msra.mxu0 %v1309
        %1507 = vmatprep.subr.bf16.mxu0 0
        %1508 = vmatpush1.bf16.msra.mxu0 %v1310
        %1509 = vmatprep.subr.bf16.mxu0 0
        %1510 = vmatpush1.bf16.msra.mxu0 %v1311
        %1511 = vmatprep.subr.bf16.mxu0 0
        %1512 = vmatpush1.bf16.msra.mxu0 %v1312
        %1513 = vmatprep.subr.bf16.mxu0 0
        %1514 = vmatpush1.bf16.msra.mxu0 %v1313
        %1515 = vmatprep.subr.bf16.mxu0 0
        %1516 = vmatpush1.bf16.msra.mxu0 0
        %1517 = vmatprep.subr.bf16.mxu0 0
        %1518 = vmatpush1.bf16.msra.mxu0 0
        %1519 = vmatprep.subr.bf16.mxu0 0
        %1520 = vmatpush1.bf16.msra.mxu0 0
        %1521 = vmatprep.subr.bf16.mxu0 0
        %1522 = vmatpush1.bf16.msra.mxu0 0
        %1523 = vmatprep.subr.bf16.mxu0 0
        %1524 = vmatpush1.bf16.msra.mxu0 0
        %1525 = vmatprep.subr.bf16.mxu0 0
        %1526 = vmatpush1.bf16.msra.mxu0 0
        %1527 = vmatprep.subr.bf16.mxu0 0
        %1528 = vmatpush1.bf16.msra.mxu0 0
        %1529 = vmatprep.subr.bf16.mxu0 0
        %1530 = vmatpush1.bf16.msra.mxu0 0
        %1531 = vmatprep.mubr.bf16.mxu0 0
        %1532 = vmatmul.mubr.bf16.gmra.mrb[0].mxu0 %v550
        %v1533 = vpop.f32.mrb[0].mxu0
        %v1534 = vadd.f32 %v1373, %v1533
        %v1535 = vpop.f32.mrb[0].mxu0
        %v1536 = vpop.f32.mrb[0].mxu0
        %v1537 = vadd.f32 %v1376, %v1536
        %v1538 = vpop.f32.mrb[0].mxu0
        %1539 = vmatprep.mubr.bf16.mxu0 0
        %1540 = vmatmul.mubr.bf16.gmra.mrb[0].mxu0 %v553
        %v1541 = vpop.f32.mrb[0].mxu0
        %v1542 = vadd.f32 %v1381, %v1541
        %v1543 = vpop.f32.mrb[0].mxu0
        %v1544 = vpop.f32.mrb[0].mxu0
        %v1545 = vadd.f32 %v1384, %v1544
        %v1546 = vpop.f32.mrb[0].mxu0
        %1547 = vmatprep.mubr.bf16.mxu0 0
        %1548 = vmatmul.mubr.bf16.gmra.mrb[0].mxu0 %v556
        %v1549 = vpop.f32.mrb[0].mxu0
        %v1550 = vadd.f32 %v1389, %v1549
        %v1551 = vpop.f32.mrb[0].mxu0
        %v1552 = vpop.f32.mrb[0].mxu0
        %v1553 = vadd.f32 %v1392, %v1552
        %v1554 = vpop.f32.mrb[0].mxu0
        %1555 = vmatprep.mubr.bf16.mxu0 0
        %1556 = vmatmul.mubr.bf16.gmra.mrb[0].mxu0 %v559
        %v1557 = vpop.f32.mrb[0].mxu0
        %v1558 = vadd.f32 %v1397, %v1557
        %v1559 = vpop.f32.mrb[0].mxu0
        %v1560 = vpop.f32.mrb[0].mxu0
        %v1561 = vadd.f32 %v1400, %v1560
        %v1562 = vpop.f32.mrb[0].mxu0
        %1563 = vmatprep.mubr.bf16.mxu0 0
        %1564 = vmatmul.mubr.bf16.gmra.mrb[0].mxu0 %v562
        %v1565 = vpop.f32.mrb[0].mxu0
        %v1566 = vadd.f32 %v1405, %v1565
        %v1567 = vpop.f32.mrb[0].mxu0
        %v1568 = vpop.f32.mrb[0].mxu0
        %v1569 = vadd.f32 %v1408, %v1568
        %v1570 = vpop.f32.mrb[0].mxu0
        %1571 = vmatprep.mubr.bf16.mxu0 0
        %1572 = vmatmul.mubr.bf16.gmra.mrb[0].mxu0 %v565
        %v1573 = vpop.f32.mrb[0].mxu0
        %v1574 = vadd.f32 %v1413, %v1573
        %v1575 = vpop.f32.mrb[0].mxu0
        %v1576 = vpop.f32.mrb[0].mxu0
        %v1577 = vadd.f32 %v1416, %v1576
        %v1578 = vpop.f32.mrb[0].mxu0
        %1579 = vmatprep.mubr.bf16.mxu0 0
        %1580 = vmatmul.mubr.bf16.gmra.mrb[0].mxu0 %v568
        %v1581 = vpop.f32.mrb[0].mxu0
        %v1582 = vadd.f32 %v1421, %v1581
        %v1583 = vpop.f32.mrb[0].mxu0
        %v1584 = vpop.f32.mrb[0].mxu0
        %v1585 = vadd.f32 %v1424, %v1584
        %v1586 = vpop.f32.mrb[0].mxu0
        %1587 = vmatprep.mubr.bf16.mxu0 0
        %1588 = vmatmul.mubr.bf16.gmra.mrb[0].mxu0 %v571
        %v1589 = vpop.f32.mrb[0].mxu0
        %v1590 = vadd.f32 %v1429, %v1589
        %v1591 = vpop.f32.mrb[0].mxu0
        %v1592 = vpop.f32.mrb[0].mxu0
        %v1593 = vadd.f32 %v1432, %v1592
        %v1594 = vpop.f32.mrb[0].mxu0
        %1595 = vmatprep.mubr.bf16.mxu0 0
        %1596 = vmatmul.mubr.bf16.gmra.mrb[0].mxu0 %v574
        %v1597 = vpop.f32.mrb[0].mxu0
        %v1598 = vadd.f32 %v1437, %v1597
        %v1599 = vpop.f32.mrb[0].mxu0
        %v1600 = vpop.f32.mrb[0].mxu0
        %v1601 = vadd.f32 %v1440, %v1600
        %v1602 = vpop.f32.mrb[0].mxu0
        %1603 = vmatprep.mubr.bf16.mxu0 0
        %1604 = vmatmul.mubr.bf16.gmra.mrb[0].mxu0 %v577
        %v1605 = vpop.f32.mrb[0].mxu0
        %v1606 = vadd.f32 %v1445, %v1605
        %v1607 = vpop.f32.mrb[0].mxu0
        %v1608 = vpop.f32.mrb[0].mxu0
        %v1609 = vadd.f32 %v1448, %v1608
        %v1610 = vpop.f32.mrb[0].mxu0
        %1611 = vmatprep.mubr.bf16.mxu0 0
        %1612 = vmatmul.mubr.bf16.gmra.mrb[0].mxu0 %v580
        %v1613 = vpop.f32.mrb[0].mxu0
        %v1614 = vadd.f32 %v1453, %v1613
        %v1615 = vpop.f32.mrb[0].mxu0
        %v1616 = vpop.f32.mrb[0].mxu0
        %v1617 = vadd.f32 %v1456, %v1616
        %v1618 = vpop.f32.mrb[0].mxu0
        %1619 = vmatprep.mubr.bf16.mxu0 0
        %1620 = vmatmul.mubr.bf16.gmra.mrb[0].mxu0 %v583
        %v1621 = vpop.f32.mrb[0].mxu0
        %v1622 = vadd.f32 %v1461, %v1621
        %v1623 = vpop.f32.mrb[0].mxu0
        %v1624 = vpop.f32.mrb[0].mxu0
        %v1625 = vadd.f32 %v1464, %v1624
        %v1626 = vpop.f32.mrb[0].mxu0
        %1627 = vmatprep.mubr.bf16.mxu0 0
        %1628 = vmatmul.mubr.bf16.gmra.mrb[0].mxu0 %v586
        %v1629 = vpop.f32.mrb[0].mxu0
        %v1630 = vadd.f32 %v1469, %v1629
        %v1631 = vpop.f32.mrb[0].mxu0
        %v1632 = vpop.f32.mrb[0].mxu0
        %v1633 = vadd.f32 %v1472, %v1632
        %v1634 = vpop.f32.mrb[0].mxu0
        %1635 = vmatprep.mubr.bf16.mxu0 0
        %1636 = vmatmul.mubr.bf16.gmra.mrb[0].mxu0 %v589
        %v1637 = vpop.f32.mrb[0].mxu0
        %v1638 = vadd.f32 %v1477, %v1637
        %v1639 = vpop.f32.mrb[0].mxu0
        %v1640 = vpop.f32.mrb[0].mxu0
        %v1641 = vadd.f32 %v1480, %v1640
        %v1642 = vpop.f32.mrb[0].mxu0
        %1643 = vmatprep.mubr.bf16.mxu0 0
        %1644 = vmatmul.mubr.bf16.gmra.mrb[0].mxu0 %v592
        %v1645 = vpop.f32.mrb[0].mxu0
        %v1646 = vadd.f32 %v1485, %v1645
        %v1647 = vpop.f32.mrb[0].mxu0
        %v1648 = vpop.f32.mrb[0].mxu0
        %v1649 = vadd.f32 %v1488, %v1648
        %v1650 = vpop.f32.mrb[0].mxu0
        %1651 = vmatprep.mubr.bf16.mxu0 0
        %1652 = vmatmul.mubr.bf16.gmra.mrb[0].mxu0 %v595
        %v1653 = vpop.f32.mrb[0].mxu0
        %v1654 = vadd.f32 %v1493, %v1653
        %v1655 = vpop.f32.mrb[0].mxu0
        %v1656 = vpop.f32.mrb[0].mxu0
        %v1657 = vadd.f32 %v1496, %v1656
        %v1658 = vpop.f32.mrb[0].mxu0
        %1659 = vdwg.mxu0
        %v1661 = vshrl.u32 %v304, 16
        %v1663 = vshll.u32 %v304, 16
        %v1665 = vrot.slane %v1663, 1
        %v1666 = vor.u32 %v1661, %v1665
        %v1668 = vshll.u32 %v305, 16
        %v1670 = vrot.slane %v1668, 1
        %v1671 = vsel %vm306, %v1666, %v1670
        %v1675 = vrot.slane %v304, 1
        %v1676 = vrot.slane %v305, 1
        %v1677 = vsel %vm547, %v1675, %v1676
        %s1679 = scalar_lea.vmem [#allocation5], 384
        %v1680 = vld [vmem:[%s1679] sm:$0xf]
        %v1681 = vld [vmem:[%s1679 + $0x4] sm:$0xf]
        %v1682 = vld [vmem:[%s1679 + $0x8] sm:$0xf]
        %v1683 = vld [vmem:[%s1679 + $0xc] sm:$0xf]
        %v1684 = vld [vmem:[%s1679 + $0x10] sm:$0xf]
        %v1685 = vld [vmem:[%s1679 + $0x14] sm:$0xf]
        %v1686 = vld [vmem:[%s1679 + $0x18] sm:$0xf]
        %v1687 = vld [vmem:[%s1679 + $0x1c] sm:$0xf]
        %v1688 = vld [vmem:[%s1679 + $0x20] sm:$0xf]
        %v1689 = vld [vmem:[%s1679 + $0x24] sm:$0xf]
        %v1690 = vld [vmem:[%s1679 + $0x28] sm:$0xf]
        %v1691 = vld [vmem:[%s1679 + $0x2c] sm:$0xf]
        %v1692 = vld [vmem:[%s1679 + $0x30] sm:$0xf]
        %v1693 = vld [vmem:[%s1679 + $0x34] sm:$0xf]
        %v1694 = vld [vmem:[%s1679 + $0x38] sm:$0xf]
        %v1695 = vld [vmem:[%s1679 + $0x3c] sm:$0xf]
        %v1696 = vld [vmem:[%s1679 + $0x40] sm:$0xf]
        %v1697 = vld [vmem:[%s1679 + $0x44] sm:$0xf]
        %v1698 = vld [vmem:[%s1679 + $0x48] sm:$0xf]
        %v1699 = vld [vmem:[%s1679 + $0x4c] sm:$0xf]
        %v1700 = vld [vmem:[%s1679 + $0x50] sm:$0xf]
        %v1701 = vld [vmem:[%s1679 + $0x54] sm:$0xf]
        %v1702 = vld [vmem:[%s1679 + $0x58] sm:$0xf]
        %v1703 = vld [vmem:[%s1679 + $0x5c] sm:$0xf]
        %v1704 = vld [vmem:[%s1679 + $0x60] sm:$0xf]
        %v1705 = vld [vmem:[%s1679 + $0x64] sm:$0xf]
        %v1706 = vld [vmem:[%s1679 + $0x68] sm:$0xf]
        %v1707 = vld [vmem:[%s1679 + $0x6c] sm:$0xf]
        %v1708 = vld [vmem:[%s1679 + $0x70] sm:$0xf]
        %v1709 = vld [vmem:[%s1679 + $0x74] sm:$0xf]
        %v1710 = vld [vmem:[%s1679 + $0x78] sm:$0xf]
        %v1711 = vld [vmem:[%s1679 + $0x7c] sm:$0xf]
        %v1712 = vld [vmem:[%s1679 + $0x80] sm:$0xf]
        %v1713 = vld [vmem:[%s1679 + $0x84] sm:$0xf]
        %v1714 = vld [vmem:[%s1679 + $0x88] sm:$0xf]
        %v1715 = vld [vmem:[%s1679 + $0x8c] sm:$0xf]
        %v1716 = vld [vmem:[%s1679 + $0x90] sm:$0xf]
        %v1717 = vld [vmem:[%s1679 + $0x94] sm:$0xf]
        %v1718 = vld [vmem:[%s1679 + $0x98] sm:$0xf]
        %v1719 = vld [vmem:[%s1679 + $0x9c] sm:$0xf]
        %v1720 = vld [vmem:[%s1679 + $0xa0] sm:$0xf]
        %v1721 = vld [vmem:[%s1679 + $0xa4] sm:$0xf]
        %v1722 = vld [vmem:[%s1679 + $0xa8] sm:$0xf]
        %v1723 = vld [vmem:[%s1679 + $0xac] sm:$0xf]
        %v1724 = vld [vmem:[%s1679 + $0xb0] sm:$0xf]
        %v1725 = vld [vmem:[%s1679 + $0xb4] sm:$0xf]
        %v1726 = vld [vmem:[%s1679 + $0xb8] sm:$0xf]
        %v1727 = vld [vmem:[%s1679 + $0xbc] sm:$0xf]
        %v1776 = vunpack.c.l.b16 %v1680
        %v1777 = vunpack.c.l.b16 %v1681
        %v1778 = vunpack.c.l.b16 %v1682
        %v1779 = vunpack.c.l.b16 %v1683
        %v1780 = vunpack.c.l.b16 %v1684
        %v1781 = vunpack.c.l.b16 %v1685
        %v1782 = vunpack.c.l.b16 %v1686
        %v1783 = vunpack.c.l.b16 %v1687
        %v1784 = vunpack.c.l.b16 %v1688
        %v1785 = vunpack.c.l.b16 %v1689
        %v1786 = vunpack.c.l.b16 %v1690
        %v1787 = vunpack.c.l.b16 %v1691
        %v1788 = vunpack.c.l.b16 %v1692
        %v1789 = vunpack.c.l.b16 %v1693
        %v1790 = vunpack.c.l.b16 %v1694
        %v1791 = vunpack.c.l.b16 %v1695
        %v1792 = vunpack.c.l.b16 %v1696
        %v1793 = vunpack.c.l.b16 %v1697
        %v1794 = vunpack.c.l.b16 %v1698
        %v1795 = vunpack.c.l.b16 %v1699
        %v1796 = vunpack.c.l.b16 %v1700
        %v1797 = vunpack.c.l.b16 %v1701
        %v1798 = vunpack.c.l.b16 %v1702
        %v1799 = vunpack.c.l.b16 %v1703
        %v1800 = vunpack.c.l.b16 %v1704
        %v1801 = vunpack.c.l.b16 %v1705
        %v1802 = vunpack.c.l.b16 %v1706
        %v1803 = vunpack.c.l.b16 %v1707
        %v1804 = vunpack.c.l.b16 %v1708
        %v1805 = vunpack.c.l.b16 %v1709
        %v1806 = vunpack.c.l.b16 %v1710
        %v1807 = vunpack.c.l.b16 %v1711
        %v1808 = vunpack.c.l.b16 %v1712
        %v1809 = vunpack.c.l.b16 %v1713
        %v1810 = vunpack.c.l.b16 %v1714
        %v1811 = vunpack.c.l.b16 %v1715
        %v1812 = vunpack.c.l.b16 %v1716
        %v1813 = vunpack.c.l.b16 %v1717
        %v1814 = vunpack.c.l.b16 %v1718
        %v1815 = vunpack.c.l.b16 %v1719
        %v1816 = vunpack.c.l.b16 %v1720
        %v1817 = vunpack.c.l.b16 %v1721
        %v1818 = vunpack.c.l.b16 %v1722
        %v1819 = vunpack.c.l.b16 %v1723
        %v1820 = vunpack.c.l.b16 %v1724
        %v1821 = vunpack.c.l.b16 %v1725
        %v1822 = vunpack.c.l.b16 %v1726
        %v1823 = vunpack.c.l.b16 %v1727
        %v1824 = vpack.c.b16 %v1777, %v1776
        %v1825 = vpack.c.b16 %v1779, %v1778
        %v1826 = vpack.c.b16 %v1781, %v1780
        %v1827 = vpack.c.b16 %v1783, %v1782
        %v1828 = vpack.c.b16 %v1785, %v1784
        %v1829 = vpack.c.b16 %v1787, %v1786
        %v1830 = vpack.c.b16 %v1789, %v1788
        %v1831 = vpack.c.b16 %v1791, %v1790
        %v1832 = vpack.c.b16 %v1793, %v1792
        %v1833 = vpack.c.b16 %v1795, %v1794
        %v1834 = vpack.c.b16 %v1797, %v1796
        %v1835 = vpack.c.b16 %v1799, %v1798
        %v1836 = vpack.c.b16 %v1801, %v1800
        %v1837 = vpack.c.b16 %v1803, %v1802
        %v1838 = vpack.c.b16 %v1805, %v1804
        %v1839 = vpack.c.b16 %v1807, %v1806
        %v1840 = vpack.c.b16 %v1809, %v1808
        %v1841 = vpack.c.b16 %v1811, %v1810
        %v1842 = vpack.c.b16 %v1813, %v1812
        %v1843 = vpack.c.b16 %v1815, %v1814
        %v1844 = vpack.c.b16 %v1817, %v1816
        %v1845 = vpack.c.b16 %v1819, %v1818
        %v1846 = vpack.c.b16 %v1821, %v1820
        %v1847 = vpack.c.b16 %v1823, %v1822
        %1872 = vmatprep.subr.bf16.mxu0 0
        %1873 = vmatpush1.bf16.msra.mxu0 %v1824
        %1874 = vmatprep.subr.bf16.mxu0 0
        %1875 = vmatpush1.bf16.msra.mxu0 %v1825
        %1876 = vmatprep.subr.bf16.mxu0 0
        %1877 = vmatpush1.bf16.msra.mxu0 %v1826
        %1878 = vmatprep.subr.bf16.mxu0 0
        %1879 = vmatpush1.bf16.msra.mxu0 %v1827
        %1880 = vmatprep.subr.bf16.mxu0 0
        %1881 = vmatpush1.bf16.msra.mxu0 %v1828
        %1882 = vmatprep.subr.bf16.mxu0 0
        %1883 = vmatpush1.bf16.msra.mxu0 %v1829
        %1884 = vmatprep.subr.bf16.mxu0 0
        %1885 = vmatpush1.bf16.msra.mxu0 %v1830
        %1886 = vmatprep.subr.bf16.mxu0 0
        %1887 = vmatpush1.bf16.msra.mxu0 %v1831
        %1888 = vmatprep.subr.bf16.mxu0 0
        %1889 = vmatpush1.bf16.msra.mxu0 %v1832
        %1890 = vmatprep.subr.bf16.mxu0 0
        %1891 = vmatpush1.bf16.msra.mxu0 %v1833
        %1892 = vmatprep.subr.bf16.mxu0 0
        %1893 = vmatpush1.bf16.msra.mxu0 %v1834
        %1894 = vmatprep.subr.bf16.mxu0 0
        %1895 = vmatpush1.bf16.msra.mxu0 %v1835
        %1896 = vmatprep.subr.bf16.mxu0 0
        %1897 = vmatpush1.bf16.msra.mxu0 %v1836
        %1898 = vmatprep.subr.bf16.mxu0 0
        %1899 = vmatpush1.bf16.msra.mxu0 %v1837
        %1900 = vmatprep.subr.bf16.mxu0 0
        %1901 = vmatpush1.bf16.msra.mxu0 %v1838
        %1902 = vmatprep.subr.bf16.mxu0 0
        %1903 = vmatpush1.bf16.msra.mxu0 %v1839
        %1904 = vmatprep.mubr.bf16.mxu0 %v342
        %1905 = vmatmul.mubr.bf16.gmra.mrb[0].mxu0 %v274
        %v1906 = vpop.f32.mrb[0].mxu0
        %v1907 = vadd.f32 0.0, %v1906
        %v1908 = vpop.f32.mrb[0].mxu0
        %v1909 = vpop.f32.mrb[0].mxu0
        %v1910 = vadd.f32 0.0, %v1909
        %v1911 = vpop.f32.mrb[0].mxu0
        %1912 = vmatprep.mubr.bf16.mxu0 %v354
        %1913 = vmatmul.mubr.bf16.gmra.mrb[0].mxu0 %v276
        %v1914 = vpop.f32.mrb[0].mxu0
        %v1915 = vadd.f32 0.0, %v1914
        %v1916 = vpop.f32.mrb[0].mxu0
        %v1917 = vpop.f32.mrb[0].mxu0
        %v1918 = vadd.f32 0.0, %v1917
        %v1919 = vpop.f32.mrb[0].mxu0
        %1920 = vmatprep.mubr.bf16.mxu0 %v366
        %1921 = vmatmul.mubr.bf16.gmra.mrb[0].mxu0 %v278
        %v1922 = vpop.f32.mrb[0].mxu0
        %v1923 = vadd.f32 0.0, %v1922
        %v1924 = vpop.f32.mrb[0].mxu0
        %v1925 = vpop.f32.mrb[0].mxu0
        %v1926 = vadd.f32 0.0, %v1925
        %v1927 = vpop.f32.mrb[0].mxu0
        %1928 = vmatprep.mubr.bf16.mxu0 %v378
        %1929 = vmatmul.mubr.bf16.gmra.mrb[0].mxu0 %v280
        %v1930 = vpop.f32.mrb[0].mxu0
        %v1931 = vadd.f32 0.0, %v1930
        %v1932 = vpop.f32.mrb[0].mxu0
        %v1933 = vpop.f32.mrb[0].mxu0
        %v1934 = vadd.f32 0.0, %v1933
        %v1935 = vpop.f32.mrb[0].mxu0
        %1936 = vmatprep.mubr.bf16.mxu0 %v390
        %1937 = vmatmul.mubr.bf16.gmra.mrb[0].mxu0 %v282
        %v1938 = vpop.f32.mrb[0].mxu0
        %v1939 = vadd.f32 0.0, %v1938
        %v1940 = vpop.f32.mrb[0].mxu0
        %v1941 = vpop.f32.mrb[0].mxu0
        %v1942 = vadd.f32 0.0, %v1941
        %v1943 = vpop.f32.mrb[0].mxu0
        %1944 = vmatprep.mubr.bf16.mxu0 %v402
        %1945 = vmatmul.mubr.bf16.gmra.mrb[0].mxu0 %v284
        %v1946 = vpop.f32.mrb[0].mxu0
        %v1947 = vadd.f32 0.0, %v1946
        %v1948 = vpop.f32.mrb[0].mxu0
        %v1949 = vpop.f32.mrb[0].mxu0
        %v1950 = vadd.f32 0.0, %v1949
        %v1951 = vpop.f32.mrb[0].mxu0
        %1952 = vmatprep.mubr.bf16.mxu0 %v414
        %1953 = vmatmul.mubr.bf16.gmra.mrb[0].mxu0 %v286
        %v1954 = vpop.f32.mrb[0].mxu0
        %v1955 = vadd.f32 0.0, %v1954
        %v1956 = vpop.f32.mrb[0].mxu0
        %v1957 = vpop.f32.mrb[0].mxu0
        %v1958 = vadd.f32 0.0, %v1957
        %v1959 = vpop.f32.mrb[0].mxu0
        %1960 = vmatprep.mubr.bf16.mxu0 %v426
        %1961 = vmatmul.mubr.bf16.gmra.mrb[0].mxu0 %v288
        %v1962 = vpop.f32.mrb[0].mxu0
        %v1963 = vadd.f32 0.0, %v1962
        %v1964 = vpop.f32.mrb[0].mxu0
        %v1965 = vpop.f32.mrb[0].mxu0
        %v1966 = vadd.f32 0.0, %v1965
        %v1967 = vpop.f32.mrb[0].mxu0
        %1968 = vmatprep.mubr.bf16.mxu0 %v438
        %1969 = vmatmul.mubr.bf16.gmra.mrb[0].mxu0 %v290
        %v1970 = vpop.f32.mrb[0].mxu0
        %v1971 = vadd.f32 0.0, %v1970
        %v1972 = vpop.f32.mrb[0].mxu0
        %v1973 = vpop.f32.mrb[0].mxu0
        %v1974 = vadd.f32 0.0, %v1973
        %v1975 = vpop.f32.mrb[0].mxu0
        %1976 = vmatprep.mubr.bf16.mxu0 %v450
        %1977 = vmatmul.mubr.bf16.gmra.mrb[0].mxu0 %v292
        %v1978 = vpop.f32.mrb[0].mxu0
        %v1979 = vadd.f32 0.0, %v1978
        %v1980 = vpop.f32.mrb[0].mxu0
        %v1981 = vpop.f32.mrb[0].mxu0
        %v1982 = vadd.f32 0.0, %v1981
        %v1983 = vpop.f32.mrb[0].mxu0
        %1984 = vmatprep.mubr.bf16.mxu0 %v462
        %1985 = vmatmul.mubr.bf16.gmra.mrb[0].mxu0 %v294
        %v1986 = vpop.f32.mrb[0].mxu0
        %v1987 = vadd.f32 0.0, %v1986
        %v1988 = vpop.f32.mrb[0].mxu0
        %v1989 = vpop.f32.mrb[0].mxu0
        %v1990 = vadd.f32 0.0, %v1989
        %v1991 = vpop.f32.mrb[0].mxu0
        %1992 = vmatprep.mubr.bf16.mxu0 %v474
        %1993 = vmatmul.mubr.bf16.gmra.mrb[0].mxu0 %v296
        %v1994 = vpop.f32.mrb[0].mxu0
        %v1995 = vadd.f32 0.0, %v1994
        %v1996 = vpop.f32.mrb[0].mxu0
        %v1997 = vpop.f32.mrb[0].mxu0
        %v1998 = vadd.f32 0.0, %v1997
        %v1999 = vpop.f32.mrb[0].mxu0
        %2000 = vmatprep.mubr.bf16.mxu0 %v486
        %2001 = vmatmul.mubr.bf16.gmra.mrb[0].mxu0 %v298
        %v2002 = vpop.f32.mrb[0].mxu0
        %v2003 = vadd.f32 0.0, %v2002
        %v2004 = vpop.f32.mrb[0].mxu0
        %v2005 = vpop.f32.mrb[0].mxu0
        %v2006 = vadd.f32 0.0, %v2005
        %v2007 = vpop.f32.mrb[0].mxu0
        %2008 = vmatprep.mubr.bf16.mxu0 %v498
        %2009 = vmatmul.mubr.bf16.gmra.mrb[0].mxu0 %v300
        %v2010 = vpop.f32.mrb[0].mxu0
        %v2011 = vadd.f32 0.0, %v2010
        %v2012 = vpop.f32.mrb[0].mxu0
        %v2013 = vpop.f32.mrb[0].mxu0
        %v2014 = vadd.f32 0.0, %v2013
        %v2015 = vpop.f32.mrb[0].mxu0
        %2016 = vmatprep.mubr.bf16.mxu0 %v671
        %2017 = vmatmul.mubr.bf16.gmra.mrb[0].mxu0 %v302
        %v2018 = vpop.f32.mrb[0].mxu0
        %v2019 = vadd.f32 0.0, %v2018
        %v2020 = vpop.f32.mrb[0].mxu0
        %v2021 = vpop.f32.mrb[0].mxu0
        %v2022 = vadd.f32 0.0, %v2021
        %v2023 = vpop.f32.mrb[0].mxu0
        %2024 = vmatprep.mubr.bf16.mxu0 %v1671
        %2025 = vmatmul.mubr.bf16.gmra.mrb[0].mxu0 %v304
        %v2026 = vpop.f32.mrb[0].mxu0
        %v2027 = vadd.f32 0.0, %v2026
        %v2028 = vpop.f32.mrb[0].mxu0
        %v2029 = vpop.f32.mrb[0].mxu0
        %v2030 = vadd.f32 0.0, %v2029
        %v2031 = vpop.f32.mrb[0].mxu0
        %2032 = vdwg.mxu0
        %2033 = vmatprep.subr.bf16.mxu0 0
        %2034 = vmatpush1.bf16.msra.mxu0 %v1840
        %2035 = vmatprep.subr.bf16.mxu0 0
        %2036 = vmatpush1.bf16.msra.mxu0 %v1841
        %2037 = vmatprep.subr.bf16.mxu0 0
        %2038 = vmatpush1.bf16.msra.mxu0 %v1842
        %2039 = vmatprep.subr.bf16.mxu0 0
        %2040 = vmatpush1.bf16.msra.mxu0 %v1843
        %2041 = vmatprep.subr.bf16.mxu0 0
        %2042 = vmatpush1.bf16.msra.mxu0 %v1844
        %2043 = vmatprep.subr.bf16.mxu0 0
        %2044 = vmatpush1.bf16.msra.mxu0 %v1845
        %2045 = vmatprep.subr.bf16.mxu0 0
        %2046 = vmatpush1.bf16.msra.mxu0 %v1846
        %2047 = vmatprep.subr.bf16.mxu0 0
        %2048 = vmatpush1.bf16.msra.mxu0 %v1847
        %2049 = vmatprep.subr.bf16.mxu0 0
        %2050 = vmatpush1.bf16.msra.mxu0 0
        %2051 = vmatprep.subr.bf16.mxu0 0
        %2052 = vmatpush1.bf16.msra.mxu0 0
        %2053 = vmatprep.subr.bf16.mxu0 0
        %2054 = vmatpush1.bf16.msra.mxu0 0
        %2055 = vmatprep.subr.bf16.mxu0 0
        %2056 = vmatpush1.bf16.msra.mxu0 0
        %2057 = vmatprep.subr.bf16.mxu0 0
        %2058 = vmatpush1.bf16.msra.mxu0 0
        %2059 = vmatprep.subr.bf16.mxu0 0
        %2060 = vmatpush1.bf16.msra.mxu0 0
        %2061 = vmatprep.subr.bf16.mxu0 0
        %2062 = vmatpush1.bf16.msra.mxu0 0
        %2063 = vmatprep.subr.bf16.mxu0 0
        %2064 = vmatpush1.bf16.msra.mxu0 0
        %2065 = vmatprep.mubr.bf16.mxu0 0
        %2066 = vmatmul.mubr.bf16.gmra.mrb[0].mxu0 %v556
        %v2067 = vpop.f32.mrb[0].mxu0
        %v2068 = vadd.f32 %v1907, %v2067
        %v2069 = vpop.f32.mrb[0].mxu0
        %v2070 = vpop.f32.mrb[0].mxu0
        %v2071 = vadd.f32 %v1910, %v2070
        %v2072 = vpop.f32.mrb[0].mxu0
        %2073 = vmatprep.mubr.bf16.mxu0 0
        %2074 = vmatmul.mubr.bf16.gmra.mrb[0].mxu0 %v559
        %v2075 = vpop.f32.mrb[0].mxu0
        %v2076 = vadd.f32 %v1915, %v2075
        %v2077 = vpop.f32.mrb[0].mxu0
        %v2078 = vpop.f32.mrb[0].mxu0
        %v2079 = vadd.f32 %v1918, %v2078
        %v2080 = vpop.f32.mrb[0].mxu0
        %2081 = vmatprep.mubr.bf16.mxu0 0
        %2082 = vmatmul.mubr.bf16.gmra.mrb[0].mxu0 %v562
        %v2083 = vpop.f32.mrb[0].mxu0
        %v2084 = vadd.f32 %v1923, %v2083
        %v2085 = vpop.f32.mrb[0].mxu0
        %v2086 = vpop.f32.mrb[0].mxu0
        %v2087 = vadd.f32 %v1926, %v2086
        %v2088 = vpop.f32.mrb[0].mxu0
        %2089 = vmatprep.mubr.bf16.mxu0 0
        %2090 = vmatmul.mubr.bf16.gmra.mrb[0].mxu0 %v565
        %v2091 = vpop.f32.mrb[0].mxu0
        %v2092 = vadd.f32 %v1931, %v2091
        %v2093 = vpop.f32.mrb[0].mxu0
        %v2094 = vpop.f32.mrb[0].mxu0
        %v2095 = vadd.f32 %v1934, %v2094
        %v2096 = vpop.f32.mrb[0].mxu0
        %2097 = vmatprep.mubr.bf16.mxu0 0
        %2098 = vmatmul.mubr.bf16.gmra.mrb[0].mxu0 %v568
        %v2099 = vpop.f32.mrb[0].mxu0
        %v2100 = vadd.f32 %v1939, %v2099
        %v2101 = vpop.f32.mrb[0].mxu0
        %v2102 = vpop.f32.mrb[0].mxu0
        %v2103 = vadd.f32 %v1942, %v2102
        %v2104 = vpop.f32.mrb[0].mxu0
        %2105 = vmatprep.mubr.bf16.mxu0 0
        %2106 = vmatmul.mubr.bf16.gmra.mrb[0].mxu0 %v571
        %v2107 = vpop.f32.mrb[0].mxu0
        %v2108 = vadd.f32 %v1947, %v2107
        %v2109 = vpop.f32.mrb[0].mxu0
        %v2110 = vpop.f32.mrb[0].mxu0
        %v2111 = vadd.f32 %v1950, %v2110
        %v2112 = vpop.f32.mrb[0].mxu0
        %2113 = vmatprep.mubr.bf16.mxu0 0
        %2114 = vmatmul.mubr.bf16.gmra.mrb[0].mxu0 %v574
        %v2115 = vpop.f32.mrb[0].mxu0
        %v2116 = vadd.f32 %v1955, %v2115
        %v2117 = vpop.f32.mrb[0].mxu0
        %v2118 = vpop.f32.mrb[0].mxu0
        %v2119 = vadd.f32 %v1958, %v2118
        %v2120 = vpop.f32.mrb[0].mxu0
        %2121 = vmatprep.mubr.bf16.mxu0 0
        %2122 = vmatmul.mubr.bf16.gmra.mrb[0].mxu0 %v577
        %v2123 = vpop.f32.mrb[0].mxu0
        %v2124 = vadd.f32 %v1963, %v2123
        %v2125 = vpop.f32.mrb[0].mxu0
        %v2126 = vpop.f32.mrb[0].mxu0
        %v2127 = vadd.f32 %v1966, %v2126
        %v2128 = vpop.f32.mrb[0].mxu0
        %2129 = vmatprep.mubr.bf16.mxu0 0
        %2130 = vmatmul.mubr.bf16.gmra.mrb[0].mxu0 %v580
        %v2131 = vpop.f32.mrb[0].mxu0
        %v2132 = vadd.f32 %v1971, %v2131
        %v2133 = vpop.f32.mrb[0].mxu0
        %v2134 = vpop.f32.mrb[0].mxu0
        %v2135 = vadd.f32 %v1974, %v2134
        %v2136 = vpop.f32.mrb[0].mxu0
        %2137 = vmatprep.mubr.bf16.mxu0 0
        %2138 = vmatmul.mubr.bf16.gmra.mrb[0].mxu0 %v583
        %v2139 = vpop.f32.mrb[0].mxu0
        %v2140 = vadd.f32 %v1979, %v2139
        %v2141 = vpop.f32.mrb[0].mxu0
        %v2142 = vpop.f32.mrb[0].mxu0
        %v2143 = vadd.f32 %v1982, %v2142
        %v2144 = vpop.f32.mrb[0].mxu0
        %2145 = vmatprep.mubr.bf16.mxu0 0
        %2146 = vmatmul.mubr.bf16.gmra.mrb[0].mxu0 %v586
        %v2147 = vpop.f32.mrb[0].mxu0
        %v2148 = vadd.f32 %v1987, %v2147
        %v2149 = vpop.f32.mrb[0].mxu0
        %v2150 = vpop.f32.mrb[0].mxu0
        %v2151 = vadd.f32 %v1990, %v2150
        %v2152 = vpop.f32.mrb[0].mxu0
        %2153 = vmatprep.mubr.bf16.mxu0 0
        %2154 = vmatmul.mubr.bf16.gmra.mrb[0].mxu0 %v589
        %v2155 = vpop.f32.mrb[0].mxu0
        %v2156 = vadd.f32 %v1995, %v2155
        %v2157 = vpop.f32.mrb[0].mxu0
        %v2158 = vpop.f32.mrb[0].mxu0
        %v2159 = vadd.f32 %v1998, %v2158
        %v2160 = vpop.f32.mrb[0].mxu0
        %2161 = vmatprep.mubr.bf16.mxu0 0
        %2162 = vmatmul.mubr.bf16.gmra.mrb[0].mxu0 %v592
        %v2163 = vpop.f32.mrb[0].mxu0
        %v2164 = vadd.f32 %v2003, %v2163
        %v2165 = vpop.f32.mrb[0].mxu0
        %v2166 = vpop.f32.mrb[0].mxu0
        %v2167 = vadd.f32 %v2006, %v2166
        %v2168 = vpop.f32.mrb[0].mxu0
        %2169 = vmatprep.mubr.bf16.mxu0 0
        %2170 = vmatmul.mubr.bf16.gmra.mrb[0].mxu0 %v595
        %v2171 = vpop.f32.mrb[0].mxu0
        %v2172 = vadd.f32 %v2011, %v2171
        %v2173 = vpop.f32.mrb[0].mxu0
        %v2174 = vpop.f32.mrb[0].mxu0
        %v2175 = vadd.f32 %v2014, %v2174
        %v2176 = vpop.f32.mrb[0].mxu0
        %2177 = vmatprep.mubr.bf16.mxu0 0
        %2178 = vmatmul.mubr.bf16.gmra.mrb[0].mxu0 %v677
        %v2179 = vpop.f32.mrb[0].mxu0
        %v2180 = vadd.f32 %v2019, %v2179
        %v2181 = vpop.f32.mrb[0].mxu0
        %v2182 = vpop.f32.mrb[0].mxu0
        %v2183 = vadd.f32 %v2022, %v2182
        %v2184 = vpop.f32.mrb[0].mxu0
        %2185 = vmatprep.mubr.bf16.mxu0 0
        %2186 = vmatmul.mubr.bf16.gmra.mrb[0].mxu0 %v1677
        %v2187 = vpop.f32.mrb[0].mxu0
        %v2188 = vadd.f32 %v2027, %v2187
        %v2189 = vpop.f32.mrb[0].mxu0
        %v2190 = vpop.f32.mrb[0].mxu0
        %v2191 = vadd.f32 %v2030, %v2190
        %v2192 = vpop.f32.mrb[0].mxu0
        %2193 = vdwg.mxu0
        %v2194 = vadd.f32 %v1534, %v2068
        %v2195 = vadd.f32 %v1537, %v2071
        %v2196 = vadd.f32 %v1542, %v2076
        %v2197 = vadd.f32 %v1545, %v2079
        %v2198 = vadd.f32 %v1550, %v2084
        %v2199 = vadd.f32 %v1553, %v2087
        %v2200 = vadd.f32 %v1558, %v2092
        %v2201 = vadd.f32 %v1561, %v2095
        %v2202 = vadd.f32 %v1566, %v2100
        %v2203 = vadd.f32 %v1569, %v2103
        %v2204 = vadd.f32 %v1574, %v2108
        %v2205 = vadd.f32 %v1577, %v2111
        %v2206 = vadd.f32 %v1582, %v2116
        %v2207 = vadd.f32 %v1585, %v2119
        %v2208 = vadd.f32 %v1590, %v2124
        %v2209 = vadd.f32 %v1593, %v2127
        %v2210 = vadd.f32 %v1598, %v2132
        %v2211 = vadd.f32 %v1601, %v2135
        %v2212 = vadd.f32 %v1606, %v2140
        %v2213 = vadd.f32 %v1609, %v2143
        %v2214 = vadd.f32 %v1614, %v2148
        %v2215 = vadd.f32 %v1617, %v2151
        %v2216 = vadd.f32 %v1622, %v2156
        %v2217 = vadd.f32 %v1625, %v2159
        %v2218 = vadd.f32 %v1630, %v2164
        %v2219 = vadd.f32 %v1633, %v2167
        %v2220 = vadd.f32 %v1638, %v2172
        %v2221 = vadd.f32 %v1641, %v2175
        %v2222 = vadd.f32 %v1646, %v2180
        %v2223 = vadd.f32 %v1649, %v2183
        %v2224 = vadd.f32 %v1654, %v2188
        %v2225 = vadd.f32 %v1657, %v2191
        %v2226 = vpack.c.bf16 %v2195, %v2194
        %v2227 = vpack.c.bf16 %v2197, %v2196
        %v2228 = vpack.c.bf16 %v2199, %v2198
        %v2229 = vpack.c.bf16 %v2201, %v2200
        %v2230 = vpack.c.bf16 %v2203, %v2202
        %v2231 = vpack.c.bf16 %v2205, %v2204
        %v2232 = vpack.c.bf16 %v2207, %v2206
        %v2233 = vpack.c.bf16 %v2209, %v2208
        %v2234 = vpack.c.bf16 %v2211, %v2210
        %v2235 = vpack.c.bf16 %v2213, %v2212
        %v2236 = vpack.c.bf16 %v2215, %v2214
        %v2237 = vpack.c.bf16 %v2217, %v2216
        %v2238 = vpack.c.bf16 %v2219, %v2218
        %v2239 = vpack.c.bf16 %v2221, %v2220
        %v2240 = vpack.c.bf16 %v2223, %v2222
        %v2241 = vpack.c.bf16 %v2225, %v2224
        %v2258 = vunpack.c.l.b16 %v2226
        %v2259 = vunpack.c.h.b16 %v2226
        %v2260 = vunpack.c.l.b16 %v2227
        %v2261 = vunpack.c.h.b16 %v2227
        %v2262 = vunpack.c.l.b16 %v2228
        %v2263 = vunpack.c.h.b16 %v2228
        %v2264 = vunpack.c.l.b16 %v2229
        %v2265 = vunpack.c.h.b16 %v2229
        %v2266 = vunpack.c.l.b16 %v2230
        %v2267 = vunpack.c.h.b16 %v2230
        %v2268 = vunpack.c.l.b16 %v2231
        %v2269 = vunpack.c.h.b16 %v2231
        %v2270 = vunpack.c.l.b16 %v2232
        %v2271 = vunpack.c.h.b16 %v2232
        %v2272 = vunpack.c.l.b16 %v2233
        %v2273 = vunpack.c.h.b16 %v2233
        %v2274 = vunpack.c.l.b16 %v2234
        %v2275 = vunpack.c.h.b16 %v2234
        %v2276 = vunpack.c.l.b16 %v2235
        %v2277 = vunpack.c.h.b16 %v2235
        %v2278 = vunpack.c.l.b16 %v2236
        %v2279 = vunpack.c.h.b16 %v2236
        %v2280 = vunpack.c.l.b16 %v2237
        %v2281 = vunpack.c.h.b16 %v2237
        %v2282 = vunpack.c.l.b16 %v2238
        %v2283 = vunpack.c.h.b16 %v2238
        %v2284 = vunpack.c.l.b16 %v2239
        %v2285 = vunpack.c.h.b16 %v2239
        %v2286 = vunpack.c.l.b16 %v2240
        %v2287 = vunpack.c.h.b16 %v2240
        %v2288 = vunpack.c.l.b16 %v2241
        %v2289 = vunpack.c.h.b16 %v2241
        %v2290 = vpack.c.b16 %v2258, %v2258
        %v2291 = vpack.c.b16 %v2259, %v2259
        %v2292 = vpack.c.b16 %v2260, %v2260
        %v2293 = vpack.c.b16 %v2261, %v2261
        %v2294 = vpack.c.b16 %v2262, %v2262
        %v2295 = vpack.c.b16 %v2263, %v2263
        %v2296 = vpack.c.b16 %v2264, %v2264
        %v2297 = vpack.c.b16 %v2265, %v2265
        %v2298 = vpack.c.b16 %v2266, %v2266
        %v2299 = vpack.c.b16 %v2267, %v2267
        %v2300 = vpack.c.b16 %v2268, %v2268
        %v2301 = vpack.c.b16 %v2269, %v2269
        %v2302 = vpack.c.b16 %v2270, %v2270
        %v2303 = vpack.c.b16 %v2271, %v2271
        %v2304 = vpack.c.b16 %v2272, %v2272
        %v2305 = vpack.c.b16 %v2273, %v2273
        %v2306 = vpack.c.b16 %v2274, %v2274
        %v2307 = vpack.c.b16 %v2275, %v2275
        %v2308 = vpack.c.b16 %v2276, %v2276
        %v2309 = vpack.c.b16 %v2277, %v2277
        %v2310 = vpack.c.b16 %v2278, %v2278
        %v2311 = vpack.c.b16 %v2279, %v2279
        %v2312 = vpack.c.b16 %v2280, %v2280
        %v2313 = vpack.c.b16 %v2281, %v2281
        %v2314 = vpack.c.b16 %v2282, %v2282
        %v2315 = vpack.c.b16 %v2283, %v2283
        %v2316 = vpack.c.b16 %v2284, %v2284
        %v2317 = vpack.c.b16 %v2285, %v2285
        %v2318 = vpack.c.b16 %v2286, %v2286
        %v2319 = vpack.c.b16 %v2287, %v2287
        %v2320 = vpack.c.b16 %v2288, %v2288
        %v2321 = vpack.c.b16 %v2289, %v2289
        %2354 = vst [vmem:[%s207] sm:$0xf] %v2290
        %2355 = vst [vmem:[%s207 + $0x4] sm:$0xf] %v2291
        %2356 = vst [vmem:[%s207 + $0x8] sm:$0xf] %v2292
        %2357 = vst [vmem:[%s207 + $0xc] sm:$0xf] %v2293
        %2358 = vst [vmem:[%s207 + $0x10] sm:$0xf] %v2294
        %2359 = vst [vmem:[%s207 + $0x14] sm:$0xf] %v2295
        %2360 = vst [vmem:[%s207 + $0x18] sm:$0xf] %v2296
        %2361 = vst [vmem:[%s207 + $0x1c] sm:$0xf] %v2297
        %2362 = vst [vmem:[%s207 + $0x20] sm:$0xf] %v2298
        %2363 = vst [vmem:[%s207 + $0x24] sm:$0xf] %v2299
        %2364 = vst [vmem:[%s207 + $0x28] sm:$0xf] %v2300
        %2365 = vst [vmem:[%s207 + $0x2c] sm:$0xf] %v2301
        %2366 = vst [vmem:[%s207 + $0x30] sm:$0xf] %v2302
        %2367 = vst [vmem:[%s207 + $0x34] sm:$0xf] %v2303
        %2368 = vst [vmem:[%s207 + $0x38] sm:$0xf] %v2304
        %2369 = vst [vmem:[%s207 + $0x3c] sm:$0xf] %v2305
        %2370 = vst [vmem:[%s207 + $0x40] sm:$0xf] %v2306
        %2371 = vst [vmem:[%s207 + $0x44] sm:$0xf] %v2307
        %2372 = vst [vmem:[%s207 + $0x48] sm:$0xf] %v2308
        %2373 = vst [vmem:[%s207 + $0x4c] sm:$0xf] %v2309
        %2374 = vst [vmem:[%s207 + $0x50] sm:$0xf] %v2310
        %2375 = vst [vmem:[%s207 + $0x54] sm:$0xf] %v2311
        %2376 = vst [vmem:[%s207 + $0x58] sm:$0xf] %v2312
        %2377 = vst [vmem:[%s207 + $0x5c] sm:$0xf] %v2313
        %2378 = vst [vmem:[%s207 + $0x60] sm:$0xf] %v2314
        %2379 = vst [vmem:[%s207 + $0x64] sm:$0xf] %v2315
        %2380 = vst [vmem:[%s207 + $0x68] sm:$0xf] %v2316
        %2381 = vst [vmem:[%s207 + $0x6c] sm:$0xf] %v2317
        %2382 = vst [vmem:[%s207 + $0x70] sm:$0xf] %v2318
        %2383 = vst [vmem:[%s207 + $0x74] sm:$0xf] %v2319
        %2384 = vst [vmem:[%s207 + $0x78] sm:$0xf] %v2320
        %2385 = vst [vmem:[%s207 + $0x7c] sm:$0xf] %v2321
        %v2386 = vadd.f32 %v2194, %v2195
        %v2387 = vadd.f32 %v2386, %v2196
        %v2388 = vadd.f32 %v2387, %v2197
        %v2389 = vadd.f32 %v2388, %v2198
        %v2390 = vadd.f32 %v2389, %v2199
        %v2391 = vadd.f32 %v2390, %v2200
        %v2392 = vadd.f32 %v2391, %v2201
        %v2393 = vadd.f32 %v2392, %v2202
        %v2394 = vadd.f32 %v2393, %v2203
        %v2395 = vadd.f32 %v2394, %v2204
        %v2396 = vadd.f32 %v2395, %v2205
        %v2397 = vadd.f32 %v2396, %v2206
        %v2398 = vadd.f32 %v2397, %v2207
        %v2399 = vadd.f32 %v2398, %v2208
        %v2400 = vadd.f32 %v2399, %v2209
        %v2401 = vadd.f32 %v2400, %v2210
        %v2402 = vadd.f32 %v2401, %v2211
        %v2403 = vadd.f32 %v2402, %v2212
        %v2404 = vadd.f32 %v2403, %v2213
        %v2405 = vadd.f32 %v2404, %v2214
        %v2406 = vadd.f32 %v2405, %v2215
        %v2407 = vadd.f32 %v2406, %v2216
        %v2408 = vadd.f32 %v2407, %v2217
        %v2409 = vadd.f32 %v2408, %v2218
        %v2410 = vadd.f32 %v2409, %v2219
        %v2411 = vadd.f32 %v2410, %v2220
        %v2412 = vadd.f32 %v2411, %v2221
        %v2413 = vadd.f32 %v2412, %v2222
        %v2414 = vadd.f32 %v2413, %v2223
        %v2415 = vadd.f32 %v2414, %v2224
        %v2416 = vadd.f32 %v2415, %v2225
        %v2417 = vrot.slane %v2416, 4
        %v2418 = vadd.f32 %v2416, %v2417
        %v2419 = vrot.slane %v2418, 2
        %v2420 = vadd.f32 %v2418, %v2419
        %v2421 = vrot.slane %v2420, 1
        %v2422 = vadd.f32 %v2420, %v2421
        %v2423 = vmul.f32 %v2194, %v2194
        %v2424 = vmul.f32 %v2195, %v2195
        %v2425 = vmul.f32 %v2196, %v2196
        %v2426 = vmul.f32 %v2197, %v2197
        %v2427 = vmul.f32 %v2198, %v2198
        %v2428 = vmul.f32 %v2199, %v2199
        %v2429 = vmul.f32 %v2200, %v2200
        %v2430 = vmul.f32 %v2201, %v2201
        %v2431 = vmul.f32 %v2202, %v2202
        %v2432 = vmul.f32 %v2203, %v2203
        %v2433 = vmul.f32 %v2204, %v2204
        %v2434 = vmul.f32 %v2205, %v2205
        %v2435 = vmul.f32 %v2206, %v2206
        %v2436 = vmul.f32 %v2207, %v2207
        %v2437 = vmul.f32 %v2208, %v2208
        %v2438 = vmul.f32 %v2209, %v2209
        %v2439 = vmul.f32 %v2210, %v2210
        %v2440 = vmul.f32 %v2211, %v2211
        %v2441 = vmul.f32 %v2212, %v2212
        %v2442 = vmul.f32 %v2213, %v2213
        %v2443 = vmul.f32 %v2214, %v2214
        %v2444 = vmul.f32 %v2215, %v2215
        %v2445 = vmul.f32 %v2216, %v2216
        %v2446 = vmul.f32 %v2217, %v2217
        %v2447 = vmul.f32 %v2218, %v2218
        %v2448 = vmul.f32 %v2219, %v2219
        %v2449 = vmul.f32 %v2220, %v2220
        %v2450 = vmul.f32 %v2221, %v2221
        %v2451 = vmul.f32 %v2222, %v2222
        %v2452 = vmul.f32 %v2223, %v2223
        %v2453 = vmul.f32 %v2224, %v2224
        %v2454 = vmul.f32 %v2225, %v2225
        %v2455 = vadd.f32 %v2423, %v2424
        %v2456 = vadd.f32 %v2455, %v2425
        %v2457 = vadd.f32 %v2456, %v2426
        %v2458 = vadd.f32 %v2457, %v2427
        %v2459 = vadd.f32 %v2458, %v2428
        %v2460 = vadd.f32 %v2459, %v2429
        %v2461 = vadd.f32 %v2460, %v2430
        %v2462 = vadd.f32 %v2461, %v2431
        %v2463 = vadd.f32 %v2462, %v2432
        %v2464 = vadd.f32 %v2463, %v2433
        %v2465 = vadd.f32 %v2464, %v2434
        %v2466 = vadd.f32 %v2465, %v2435
        %v2467 = vadd.f32 %v2466, %v2436
        %v2468 = vadd.f32 %v2467, %v2437
        %v2469 = vadd.f32 %v2468, %v2438
        %v2470 = vadd.f32 %v2469, %v2439
        %v2471 = vadd.f32 %v2470, %v2440
        %v2472 = vadd.f32 %v2471, %v2441
        %v2473 = vadd.f32 %v2472, %v2442
        %v2474 = vadd.f32 %v2473, %v2443
        %v2475 = vadd.f32 %v2474, %v2444
        %v2476 = vadd.f32 %v2475, %v2445
        %v2477 = vadd.f32 %v2476, %v2446
        %v2478 = vadd.f32 %v2477, %v2447
        %v2479 = vadd.f32 %v2478, %v2448
        %v2480 = vadd.f32 %v2479, %v2449
        %v2481 = vadd.f32 %v2480, %v2450
        %v2482 = vadd.f32 %v2481, %v2451
        %v2483 = vadd.f32 %v2482, %v2452
        %v2484 = vadd.f32 %v2483, %v2453
        %v2485 = vadd.f32 %v2484, %v2454
        %v2486 = vrot.slane %v2485, 4
        %v2487 = vadd.f32 %v2485, %v2486
        %v2488 = vrot.slane %v2487, 2
        %v2489 = vadd.f32 %v2487, %v2488
        %v2490 = vrot.slane %v2489, 1
        %v2491 = vadd.f32 %v2489, %v2490
        %vm2492 = vcmask 1040384
        %v2493 = vsel %vm2492, %v2422, %v2491
        %2494 = vst [vmem:[%s214] sm:$0x3] %v2493
        %s2495 = sand.u32 %s80, 1
        %s2496 = scalar_lea.sflag [#allocation4], %s2495
        %s2497 = sand.u32 %s80, 1
        %s2498 = smul.addr %s2497, 128
        %s2499 = scalar_lea.vmem [#allocation7], %s2498
        %s2500 = sand.u32 %s106, 1
        %s2501 = scalar_lea.sflag [#allocation9], %s2500
        %s2502 = sand.u32 %s106, 1
        %s2503 = smul.addr %s2502, 2
        %s2504 = scalar_lea.vmem [#allocation8], %s2503
        // Predicated region
        $region37: #{tpu_custom_call.1} parent=27 // pred_check
          %p2505 = pneg %p90
        $region38: #{tpu_custom_call.1} parent=27 // pred_check_branch
          %2507 = sbr.rel (%p2505) target = $region40
        $region39: #{tpu_custom_call.1} parent=27 // pred_region
          %s2509 = ssub.s32 2048, 2048
          %2510 = vsyncadd %s2496, %s2509
          %s2511 = smul.addr %s25, 32
          %s2512 = smul.addr %s2511, 64
          %s2513 = scalar_lea.hbm %s2, %s2512
          %s2514 = sshll.u32 %s2499, 4
          %s2515 = int_to_ptr.vmem [resolvable:$true] %s2514
          %2520 = dma.vmem_to_hbm [thread:$0]  %s2515, 2048, %s2513, %s2496, 64, 64, 4
        $region40: #{tpu_custom_call.1} parent=27 // pred_fallthru
          _
        // Predicated region
        $region41: #{tpu_custom_call.1} parent=27 // pred_check
          %p2521 = pneg %p116
        $region42: #{tpu_custom_call.1} parent=27 // pred_check_branch
          %2523 = sbr.rel (%p2521) target = $region44
        $region43: #{tpu_custom_call.1} parent=27 // pred_region
          %s2525 = ssub.s32 32, 32
          %2526 = vsyncadd %s2501, %s2525
          %s2527 = smul.addr %s25, 32
          %s2528 = scalar_lea.hbm %s3, %s2527
          %s2530 = sshll.u32 %s2504, 4
          %s2531 = int_to_ptr.vmem [resolvable:$true] %s2530
          %2533 = dma.vmem_to_hbm [thread:$0]  %s2531, 32, %s2528, %s2501
        $region44: #{tpu_custom_call.1} parent=27 // pred_fallthru
          _
      $region28: #{tpu_custom_call.1} parent=5 // pred_fallthru
        _
      %p2534 = scmp.le.s32.totalorder 2, %s20
      // Predicated region
      $region45: #{tpu_custom_call.1} parent=5 // pred_check
        %p2535 = pneg %p2534
      $region46: #{tpu_custom_call.1} parent=5 // pred_check_branch
        %2537 = sbr.rel (%p2535) target = $region48
      $region47: #{tpu_custom_call.1} parent=5 // pred_region
        %s2538 = ssub.s32 %s20, 2
        // Predicated region
        $region49: #{tpu_custom_call.1} parent=47 // pred_check
          %p2539 = pneg %p96
        $region50: #{tpu_custom_call.1} parent=47 // pred_check_branch
          %2541 = sbr.rel (%p2539) target = $region52
        $region51: #{tpu_custom_call.1} parent=47 // pred_region
          %s2542 = sand.u32 %s81, 1
          %s2543 = scalar_lea.sflag [#allocation4], %s2542
          %s2544 = sand.u32 %s81, 1
          %s2545 = smul.addr %s2544, 128
          %s2546 = scalar_lea.vmem [#allocation7], %s2545
          %2547 = dma.done %s2543, 2048
        $region52: #{tpu_custom_call.1} parent=47 // pred_fallthru
          _
        // Predicated region
        $region53: #{tpu_custom_call.1} parent=47 // pred_check
          %p2548 = pneg %p122
        $region54: #{tpu_custom_call.1} parent=47 // pred_check_branch
          %2550 = sbr.rel (%p2548) target = $region56
        $region55: #{tpu_custom_call.1} parent=47 // pred_region
          %s2551 = sand.u32 %s107, 1
          %s2552 = scalar_lea.sflag [#allocation9], %s2551
          %s2553 = sand.u32 %s107, 1
          %s2554 = smul.addr %s2553, 2
          %s2555 = scalar_lea.vmem [#allocation8], %s2554
          %2556 = dma.done %s2552, 32
        $region56: #{tpu_custom_call.1} parent=47 // pred_fallthru
          _
      $region48: #{tpu_custom_call.1} parent=5 // pred_fallthru
        _
    $region6: #{tpu_custom_call.1} parent=1 // loop_footer
      %s24 = sadd.s32 1, %s20
    $region7: #{tpu_custom_call.1} parent=1 // loop_footer_branch
      %19 = sbr.rel target = $region3
    $region8: #{tpu_custom_call.1} parent=1 // loop_exit
      _
    %2557 = vsyncpa [#allocation3], 1
    %s2558 = scalar_lea.sflag [#allocation3], 1
    %2559 = vsyncpa %s2558, 1
    %2560 = vsyncpa [#allocation6], 1
    %2561 = vsyncpa [#allocation4], 1
    %s2562 = scalar_lea.sflag [#allocation4], 1
    %2563 = vsyncpa %s2562, 1
    %2564 = vsyncpa [#allocation9], 1
    %s2565 = scalar_lea.sflag [#allocation9], 1
    %2566 = vsyncpa %s2565, 1

</llo_original>
